<compile_context>
chip_gen: v7x
topology: tpu7x:2x2x1
jax: 0.10.0
libtpu: 0.0.40
codegen_flags: <defaults>
</compile_context>

<pallas_src>
import jax
import jax.numpy as jnp
from jax.experimental import pallas as pl
from jax.experimental.pallas import tpu as pltpu

EPS = 1e-5
KH = KW = 3          # kernel_size=3, stride=1, padding=1
LANE = 128


def _round_up(x, m):
    return (x + m - 1) // m * m


def _make_kernel(N, H, W, CIN, COUT, K1P, K2P, dtype):
    NH = N * H
    K2 = W * COUT
    inv_cnt = 1.0 / float(NH * W)

    def kernel(x_ref, m1_ref, m2_ref, sup_ref, sdn_ref,
               g1_ref, be1_ref, g2_ref, be2_ref,
               sel_ref, selt_ref, out_ref):
        sup = sup_ref[...]     # (NH, NH) one-hot "row r <- row r-1", edge rows zero
        sdn = sdn_ref[...]     # (NH, NH) one-hot "row r <- row r+1", edge rows zero

        def conv3x3(v, m_ref, kp):
            # One fused MXU matmul for all three vertical taps:
            #   y = [v(r-1) | v(r) | v(r+1)] @ [M0; M1; M2]
            # dx shifts + channel contraction are folded into the banded M's
            # (wrapper-side weight preprocessing); dy shifts + cross-image
            # zeroing are folded into the one-hot sup/sdn matrices (MXU).
            vc = v.astype(dtype)
            if vc.shape[1] < kp:                         # lane-pad to 128 multiple
                vc = jnp.pad(vc, ((0, 0), (0, kp - vc.shape[1])))
            s_up = jnp.dot(sup, vc, preferred_element_type=jnp.float32).astype(dtype)
            s_dn = jnp.dot(sdn, vc, preferred_element_type=jnp.float32).astype(dtype)
            fused = jnp.concatenate([s_up, vc, s_dn], axis=1)   # (NH, 3*kp), aligned
            return jnp.dot(fused, m_ref[...], preferred_element_type=jnp.float32)

        def bn_relu(y, g_ref, be_ref):
            # Single-pass biased batch stats (train-mode BatchNorm2d) + ReLU,
            # entirely in the fused (W*Cout) lane layout.  The per-channel
            # reduction and the channel->fused-lane broadcast are tiny one-hot
            # matmuls; all statistics stay on the f32 accumulator.
            ssum = jnp.sum(y, axis=0, keepdims=True)            # (1, K2)
            ssq = jnp.sum(y * y, axis=0, keepdims=True)         # (1, K2)
            ch = jnp.dot(jnp.concatenate([ssum, ssq], axis=0), sel_ref[...],
                         preferred_element_type=jnp.float32)    # (2, COUT)
            mu = ch[0:1, :] * inv_cnt
            var = ch[1:2, :] * inv_cnt - mu * mu
            inv = jax.lax.rsqrt(var + EPS)
            scale = g_ref[...] * inv                            # (1, COUT)
            shift = be_ref[...] - mu * scale                    # (1, COUT)
            sf = jnp.dot(jnp.concatenate([scale, shift], axis=0), selt_ref[...],
                         preferred_element_type=jnp.float32)    # (2, K2)
            return jnp.maximum(y * sf[0:1, :] + sf[1:2, :], 0.0)

        x = x_ref[...]                                   # (NH, K1P), lane-padded
        y1 = bn_relu(conv3x3(x, m1_ref, K1P), g1_ref, be1_ref)
        y2 = bn_relu(conv3x3(y1, m2_ref, K2P), g2_ref, be2_ref)
        out_ref[...] = y2                                # lane-dense (NH, K2)

    return kernel


def _band_weight_matrix(w, width, kp):
    """(Cout, Cin, 3, 3) PyTorch OIHW weights -> (3*kp, width*Cout) stacked bands.

    Block dy of the stack satisfies
        M[dy][xin*Cin + ci, xout*Cout + co] = w[co, ci, dy, xin - xout + 1]
    (zero when the horizontal tap falls outside the kernel: padding=1); rows
    [width*Cin : kp) of each block are zero lane-padding.  Pure wrapper-side
    weight preprocessing, done once.
    TODO(synk): O(width^2) inflation -- for width >> 32 switch to block-banded
    weights over W-tiles to keep MXU FLOPs and resident VMEM bounded.
    """
    cout, cin = w.shape[0], w.shape[1]
    k = width * cin
    w_t = jnp.transpose(w, (2, 3, 1, 0)).astype(jnp.float32)    # (dy, dx, ci, co)
    xin = jnp.arange(width)[:, None]
    xout = jnp.arange(width)[None, :]
    dx = xin - xout + 1                                         # (W, W)
    valid = (dx >= 0) & (dx < KW)
    dxc = jnp.clip(dx, 0, KW - 1)
    mats = []
    for dy in range(KH):
        blk = w_t[dy][dxc]                                      # (W, W, Cin, Cout)
        blk = jnp.where(valid[:, :, None, None], blk, 0.0)
        m = jnp.transpose(blk, (0, 2, 1, 3)).reshape(k, width * cout)
        mats.append(jnp.pad(m, ((0, kp - k), (0, 0))))
    return jnp.concatenate(mats, axis=0)                        # (3*kp, W*Cout)


def _row_shift_matrices(N, H):
    """One-hot (NH, NH) matrices: (sup @ v)[r] = v[r-1], (sdn @ v)[r] = v[r+1],
    zero when the source row crosses an image boundary (implements padding=1
    vertically and keeps images in the batch from bleeding into each other)."""
    NH = N * H
    r = jnp.arange(NH)
    within = r % H
    sup = (r[None, :] == r[:, None] - 1) & (within[:, None] > 0)
    sdn = (r[None, :] == r[:, None] + 1) & (within[:, None] < H - 1)
    return sup.astype(jnp.float32), sdn.astype(jnp.float32)


def double_conv2d_bn_forward(x_nchw, w1, b1, g1, be1, w2, b2, g2, be2,
                             mxu_dtype=jnp.bfloat16):
    """x_nchw: (N, Cin, H, W); conv weights in PyTorch OIHW layout.

    mxu_dtype: operand dtype for the MXU matmuls (bfloat16 = native MXU path on
    v6e/v7x; float32 for bit-tighter parity with an f32 reference).  BN
    statistics and the normalize/ReLU epilogue always run in float32.
    Note: b1/b2 are accepted for interface parity but are provably cancelled by
    train-mode BatchNorm, so they never enter the kernel.
    """
    N, CIN, H, W = x_nchw.shape
    COUT = w1.shape[0]
    NH, K1, K2 = N * H, W * CIN, W * COUT
    K1P, K2P = _round_up(K1, LANE), _round_up(K2, LANE)

    # Layout glue: NCHW -> (N*H, W*Cin), channels fastest on the lane axis,
    # zero-padded to a 128-lane multiple so all in-kernel concats are aligned.
    x2d = jnp.transpose(x_nchw, (0, 2, 3, 1)).astype(jnp.float32).reshape(NH, K1)
    x2d = jnp.pad(x2d, ((0, 0), (0, K1P - K1)))

    # Weight preprocessing (no input-data compute in the wrapper).
    m1 = _band_weight_matrix(w1, W, K1P)            # (3*K1P, K2)
    m2 = _band_weight_matrix(w2, W, K2P)            # (3*K2P, K2)
    sup, sdn = _row_shift_matrices(N, H)            # (NH, NH) each
    row = lambda v: v.astype(jnp.float32).reshape(1, COUT)
    eye = jnp.eye(COUT, dtype=jnp.float32)
    sel = jnp.tile(eye, (W, 1))                     # (K2, COUT) fused-lane -> channel
    selt = jnp.tile(eye, (1, W))                    # (COUT, K2) channel -> fused-lane

    cast = lambda a: a.astype(mxu_dtype)
    isz = jnp.dtype(mxu_dtype).itemsize
    vmem = pl.BlockSpec(memory_space=pltpu.MemorySpace.VMEM)
    flops = (2 * NH * (3 * K1P) * K2 + 2 * NH * (3 * K2P) * K2
             + 2 * 2 * NH * NH * (K1P + K2P))
    bytes_accessed = (isz * (NH * K1P + 3 * K1P * K2 + 3 * K2P * K2 + 2 * NH * NH)
                      + 4 * (NH * K2 + 2 * K2 * COUT + 4 * COUT))

    out2d = pl.pallas_call(
        _make_kernel(N, H, W, CIN, COUT, K1P, K2P, mxu_dtype),
        out_shape=jax.ShapeDtypeStruct((NH, K2), jnp.float32),
        in_specs=[vmem] * 11,
        out_specs=vmem,
        compiler_params=pltpu.CompilerParams(vmem_limit_bytes=32 * 1024 * 1024),
        cost_estimate=pl.CostEstimate(flops=flops, transcendentals=2 * COUT,
                                      bytes_accessed=bytes_accessed),
    )(cast(x2d), cast(m1), cast(m2), cast(sup), cast(sdn),
      row(g1), row(be1), row(g2), row(be2), sel, selt)

    # Back to PyTorch NCHW convention (wrapper-side layout plumbing).
    return jnp.transpose(out2d.reshape(N, H, W, COUT), (0, 3, 1, 2))


def _reference(x_nchw, w1, b1, g1, be1, w2, b2, g2, be2):
    x = jnp.transpose(x_nchw, (0, 2, 3, 1)).astype(jnp.float32)

    def conv(x, w, b):
        w_hwio = jnp.transpose(w, (2, 3, 1, 0)).astype(jnp.float32)
        y = jax.lax.conv_general_dilated(
            x, w_hwio, window_strides=(1, 1), padding="SAME",
            dimension_numbers=("NHWC", "HWIO", "NHWC"))
        return y + b.reshape(1, 1, 1, -1)

    def bn_relu(y, g, be):
        mu = y.mean(axis=(0, 1, 2), keepdims=True)
        var = ((y - mu) ** 2).mean(axis=(0, 1, 2), keepdims=True)
        yhat = (y - mu) / jnp.sqrt(var + EPS)
        return jnp.maximum(yhat * g.reshape(1, 1, 1, -1) + be.reshape(1, 1, 1, -1), 0.0)

    y = bn_relu(conv(x, w1, b1), g1, be1)
    y = bn_relu(conv(y, w2, b2), g2, be2)
    return jnp.transpose(y, (0, 3, 1, 2))


if __name__ == "__main__":
    key = jax.random.PRNGKey(0)
    N, CIN, COUT, H, W = 2, 4, 8, 16, 16

    ks = jax.random.split(key, 8)
    x = jax.random.normal(ks[0], (N, CIN, H, W), jnp.float32)

    # Deterministic parameter init (shapes per nn.Conv2d / nn.BatchNorm2d).
    fan1 = CIN * KH * KW
    fan2 = COUT * KH * KW
    w1 = jax.random.uniform(ks[1], (COUT, CIN, KH, KW), jnp.float32,
                            -1.0 / fan1 ** 0.5, 1.0 / fan1 ** 0.5)
    b1 = jax.random.uniform(ks[2], (COUT,), jnp.float32,
                            -1.0 / fan1 ** 0.5, 1.0 / fan1 ** 0.5)
    w2 = jax.random.uniform(ks[3], (COUT, COUT, KH, KW), jnp.float32,
                            -1.0 / fan2 ** 0.5, 1.0 / fan2 ** 0.5)
    b2 = jax.random.uniform(ks[4], (COUT,), jnp.float32,
                            -1.0 / fan2 ** 0.5, 1.0 / fan2 ** 0.5)
    g1 = 1.0 + 0.1 * jax.random.normal(ks[5], (COUT,), jnp.float32)
    be1 = 0.1 * jax.random.normal(ks[6], (COUT,), jnp.float32)
    g2 = 1.0 + 0.1 * jax.random.normal(ks[7], (COUT,), jnp.float32)
    be2 = jnp.zeros((COUT,), jnp.float32)

    ref = _reference(x, w1, b1, g1, be1, w2, b2, g2, be2)

    # f32 MXU operands: tight parity with the f32 reference.
    out_f32 = double_conv2d_bn_forward(x, w1, b1, g1, be1, w2, b2, g2, be2,
                                       mxu_dtype=jnp.float32)
    out_f32 = jax.block_until_ready(out_f32)
    assert out_f32.shape == (N, COUT, H, W), out_f32.shape
    err_f32 = float(jnp.max(jnp.abs(out_f32 - ref)))
    assert jnp.allclose(out_f32, ref, atol=2e-3, rtol=2e-3), err_f32

    # bf16 MXU operands (native v6e/v7x MXU path); BN stats stay f32.
    out_bf16 = double_conv2d_bn_forward(x, w1, b1, g1, be1, w2, b2, g2, be2,
                                        mxu_dtype=jnp.bfloat16)
    out_bf16 = jax.block_until_ready(out_bf16)
    err_bf16 = float(jnp.max(jnp.abs(out_bf16 - ref)))
    assert jnp.allclose(out_bf16, ref, atol=6e-2, rtol=6e-2), err_bf16

    print("KERNEL_OK")
</pallas_src>

<mosaic_0001>
module attributes {stable_mosaic.version = 11 : i64} {
  func.func @kernel(%arg0: memref<32x128xf32, #tpu.memory_space<vmem>>, %arg1: memref<384x128xf32, #tpu.memory_space<vmem>>, %arg2: memref<384x128xf32, #tpu.memory_space<vmem>>, %arg3: memref<32x32xf32, #tpu.memory_space<vmem>>, %arg4: memref<32x32xf32, #tpu.memory_space<vmem>>, %arg5: memref<1x8xf32, #tpu.memory_space<vmem>>, %arg6: memref<1x8xf32, #tpu.memory_space<vmem>>, %arg7: memref<1x8xf32, #tpu.memory_space<vmem>>, %arg8: memref<1x8xf32, #tpu.memory_space<vmem>>, %arg9: memref<128x8xf32, #tpu.memory_space<vmem>>, %arg10: memref<8x128xf32, #tpu.memory_space<vmem>>, %arg11: memref<32x128xf32, #tpu.memory_space<vmem>>) attributes {dimension_semantics = [], scalar_prefetch = 0 : i64, scratch_operands = 0 : i64, tpu.core_type = #tpu.core_type<tc>} {
    %c0 = arith.constant 0 : index
    %c0_0 = arith.constant 0 : index
    %0 = vector.load %arg3[%c0, %c0_0] : memref<32x32xf32, #tpu.memory_space<vmem>>, vector<32x32xf32>
    %c0_1 = arith.constant 0 : index
    %c0_2 = arith.constant 0 : index
    %1 = vector.load %arg4[%c0_1, %c0_2] : memref<32x32xf32, #tpu.memory_space<vmem>>, vector<32x32xf32>
    %c0_3 = arith.constant 0 : index
    %c0_4 = arith.constant 0 : index
    %2 = vector.load %arg0[%c0_3, %c0_4] : memref<32x128xf32, #tpu.memory_space<vmem>>, vector<32x128xf32>
    %cst = arith.constant dense<0.000000e+00> : vector<32x128xf32>
    %3 = tpu.matmul %0, %2, %cst {dimension_numbers = #tpu.dot_dimension_numbers<[1], [0], [0], [1], [0, 0, 1, 1], [], []>} : vector<32x32xf32>, vector<32x128xf32>, vector<32x128xf32> -> vector<32x128xf32>
    %cst_5 = arith.constant dense<0.000000e+00> : vector<32x128xf32>
    %4 = tpu.matmul %1, %2, %cst_5 {dimension_numbers = #tpu.dot_dimension_numbers<[1], [0], [0], [1], [0, 0, 1, 1], [], []>} : vector<32x32xf32>, vector<32x128xf32>, vector<32x128xf32> -> vector<32x128xf32>
    %5 = tpu.concatenate %3, %2, %4 in 1 : vector<32x128xf32>, vector<32x128xf32>, vector<32x128xf32> -> vector<32x384xf32>
    %c0_6 = arith.constant 0 : index
    %c0_7 = arith.constant 0 : index
    %6 = vector.load %arg1[%c0_6, %c0_7] : memref<384x128xf32, #tpu.memory_space<vmem>>, vector<384x128xf32>
    %cst_8 = arith.constant dense<0.000000e+00> : vector<32x128xf32>
    %7 = tpu.matmul %5, %6, %cst_8 {dimension_numbers = #tpu.dot_dimension_numbers<[1], [0], [0], [1], [0, 0, 1, 1], [], []>} : vector<32x384xf32>, vector<384x128xf32>, vector<32x128xf32> -> vector<32x128xf32>
    %cst_9 = arith.constant dense<0.000000e+00> : vector<128xf32>
    %8 = vector.multi_reduction <add>, %7, %cst_9 [0] : vector<32x128xf32> to vector<128xf32>
    %9 = vector.shape_cast %8 : vector<128xf32> to vector<1x128xf32>
    %10 = arith.mulf %7, %7 : vector<32x128xf32>
    %cst_10 = arith.constant dense<0.000000e+00> : vector<128xf32>
    %11 = vector.multi_reduction <add>, %10, %cst_10 [0] : vector<32x128xf32> to vector<128xf32>
    %12 = vector.shape_cast %11 : vector<128xf32> to vector<1x128xf32>
    %13 = tpu.concatenate %9, %12 in 0 : vector<1x128xf32>, vector<1x128xf32> -> vector<2x128xf32>
    %c0_11 = arith.constant 0 : index
    %c0_12 = arith.constant 0 : index
    %14 = vector.load %arg9[%c0_11, %c0_12] : memref<128x8xf32, #tpu.memory_space<vmem>>, vector<128x8xf32>
    %cst_13 = arith.constant dense<0.000000e+00> : vector<2x8xf32>
    %15 = tpu.matmul %13, %14, %cst_13 {dimension_numbers = #tpu.dot_dimension_numbers<[1], [0], [0], [1], [0, 0, 1, 1], [], []>} : vector<2x128xf32>, vector<128x8xf32>, vector<2x8xf32> -> vector<2x8xf32>
    %16 = vector.extract_strided_slice %15 {offsets = [0, 0], sizes = [1, 8], strides = [1, 1]} : vector<2x8xf32> to vector<1x8xf32>
    %cst_14 = arith.constant 0.001953125 : f32
    %17 = vector.broadcast %cst_14 : f32 to vector<1x8xf32>
    %18 = arith.mulf %16, %17 : vector<1x8xf32>
    %19 = vector.extract_strided_slice %15 {offsets = [1, 0], sizes = [1, 8], strides = [1, 1]} : vector<2x8xf32> to vector<1x8xf32>
    %cst_15 = arith.constant 0.001953125 : f32
    %20 = vector.broadcast %cst_15 : f32 to vector<1x8xf32>
    %21 = arith.mulf %19, %20 : vector<1x8xf32>
    %22 = arith.mulf %18, %18 : vector<1x8xf32>
    %23 = arith.subf %21, %22 : vector<1x8xf32>
    %cst_16 = arith.constant 9.99999974E-6 : f32
    %24 = vector.broadcast %cst_16 : f32 to vector<1x8xf32>
    %25 = arith.addf %23, %24 : vector<1x8xf32>
    %26 = math.rsqrt %25 : vector<1x8xf32>
    %c0_17 = arith.constant 0 : index
    %c0_18 = arith.constant 0 : index
    %27 = vector.load %arg5[%c0_17, %c0_18] : memref<1x8xf32, #tpu.memory_space<vmem>>, vector<1x8xf32>
    %28 = arith.mulf %27, %26 : vector<1x8xf32>
    %c0_19 = arith.constant 0 : index
    %c0_20 = arith.constant 0 : index
    %29 = vector.load %arg6[%c0_19, %c0_20] : memref<1x8xf32, #tpu.memory_space<vmem>>, vector<1x8xf32>
    %30 = arith.mulf %18, %28 : vector<1x8xf32>
    %31 = arith.subf %29, %30 : vector<1x8xf32>
    %32 = tpu.concatenate %28, %31 in 0 : vector<1x8xf32>, vector<1x8xf32> -> vector<2x8xf32>
    %c0_21 = arith.constant 0 : index
    %c0_22 = arith.constant 0 : index
    %33 = vector.load %arg10[%c0_21, %c0_22] : memref<8x128xf32, #tpu.memory_space<vmem>>, vector<8x128xf32>
    %cst_23 = arith.constant dense<0.000000e+00> : vector<2x128xf32>
    %34 = tpu.matmul %32, %33, %cst_23 {dimension_numbers = #tpu.dot_dimension_numbers<[1], [0], [0], [1], [0, 0, 1, 1], [], []>} : vector<2x8xf32>, vector<8x128xf32>, vector<2x128xf32> -> vector<2x128xf32>
    %35 = vector.extract_strided_slice %34 {offsets = [0, 0], sizes = [1, 128], strides = [1, 1]} : vector<2x128xf32> to vector<1x128xf32>
    %36 = vector.broadcast %35 : vector<1x128xf32> to vector<32x128xf32>
    %37 = arith.mulf %7, %36 : vector<32x128xf32>
    %38 = vector.extract_strided_slice %34 {offsets = [1, 0], sizes = [1, 128], strides = [1, 1]} : vector<2x128xf32> to vector<1x128xf32>
    %39 = vector.broadcast %38 : vector<1x128xf32> to vector<32x128xf32>
    %40 = arith.addf %37, %39 : vector<32x128xf32>
    %cst_24 = arith.constant 0.000000e+00 : f32
    %41 = vector.broadcast %cst_24 : f32 to vector<32x128xf32>
    %42 = arith.maximumf %40, %41 : vector<32x128xf32>
    %cst_25 = arith.constant dense<0.000000e+00> : vector<32x128xf32>
    %43 = tpu.matmul %0, %42, %cst_25 {dimension_numbers = #tpu.dot_dimension_numbers<[1], [0], [0], [1], [0, 0, 1, 1], [], []>} : vector<32x32xf32>, vector<32x128xf32>, vector<32x128xf32> -> vector<32x128xf32>
    %cst_26 = arith.constant dense<0.000000e+00> : vector<32x128xf32>
    %44 = tpu.matmul %1, %42, %cst_26 {dimension_numbers = #tpu.dot_dimension_numbers<[1], [0], [0], [1], [0, 0, 1, 1], [], []>} : vector<32x32xf32>, vector<32x128xf32>, vector<32x128xf32> -> vector<32x128xf32>
    %45 = tpu.concatenate %43, %42, %44 in 1 : vector<32x128xf32>, vector<32x128xf32>, vector<32x128xf32> -> vector<32x384xf32>
    %c0_27 = arith.constant 0 : index
    %c0_28 = arith.constant 0 : index
    %46 = vector.load %arg2[%c0_27, %c0_28] : memref<384x128xf32, #tpu.memory_space<vmem>>, vector<384x128xf32>
    %cst_29 = arith.constant dense<0.000000e+00> : vector<32x128xf32>
    %47 = tpu.matmul %45, %46, %cst_29 {dimension_numbers = #tpu.dot_dimension_numbers<[1], [0], [0], [1], [0, 0, 1, 1], [], []>} : vector<32x384xf32>, vector<384x128xf32>, vector<32x128xf32> -> vector<32x128xf32>
    %cst_30 = arith.constant dense<0.000000e+00> : vector<128xf32>
    %48 = vector.multi_reduction <add>, %47, %cst_30 [0] : vector<32x128xf32> to vector<128xf32>
    %49 = vector.shape_cast %48 : vector<128xf32> to vector<1x128xf32>
    %50 = arith.mulf %47, %47 : vector<32x128xf32>
    %cst_31 = arith.constant dense<0.000000e+00> : vector<128xf32>
    %51 = vector.multi_reduction <add>, %50, %cst_31 [0] : vector<32x128xf32> to vector<128xf32>
    %52 = vector.shape_cast %51 : vector<128xf32> to vector<1x128xf32>
    %53 = tpu.concatenate %49, %52 in 0 : vector<1x128xf32>, vector<1x128xf32> -> vector<2x128xf32>
    %c0_32 = arith.constant 0 : index
    %c0_33 = arith.constant 0 : index
    %54 = vector.load %arg9[%c0_32, %c0_33] : memref<128x8xf32, #tpu.memory_space<vmem>>, vector<128x8xf32>
    %cst_34 = arith.constant dense<0.000000e+00> : vector<2x8xf32>
    %55 = tpu.matmul %53, %54, %cst_34 {dimension_numbers = #tpu.dot_dimension_numbers<[1], [0], [0], [1], [0, 0, 1, 1], [], []>} : vector<2x128xf32>, vector<128x8xf32>, vector<2x8xf32> -> vector<2x8xf32>
    %56 = vector.extract_strided_slice %55 {offsets = [0, 0], sizes = [1, 8], strides = [1, 1]} : vector<2x8xf32> to vector<1x8xf32>
    %cst_35 = arith.constant 0.001953125 : f32
    %57 = vector.broadcast %cst_35 : f32 to vector<1x8xf32>
    %58 = arith.mulf %56, %57 : vector<1x8xf32>
    %59 = vector.extract_strided_slice %55 {offsets = [1, 0], sizes = [1, 8], strides = [1, 1]} : vector<2x8xf32> to vector<1x8xf32>
    %cst_36 = arith.constant 0.001953125 : f32
    %60 = vector.broadcast %cst_36 : f32 to vector<1x8xf32>
    %61 = arith.mulf %59, %60 : vector<1x8xf32>
    %62 = arith.mulf %58, %58 : vector<1x8xf32>
    %63 = arith.subf %61, %62 : vector<1x8xf32>
    %cst_37 = arith.constant 9.99999974E-6 : f32
    %64 = vector.broadcast %cst_37 : f32 to vector<1x8xf32>
    %65 = arith.addf %63, %64 : vector<1x8xf32>
    %66 = math.rsqrt %65 : vector<1x8xf32>
    %c0_38 = arith.constant 0 : index
    %c0_39 = arith.constant 0 : index
    %67 = vector.load %arg7[%c0_38, %c0_39] : memref<1x8xf32, #tpu.memory_space<vmem>>, vector<1x8xf32>
    %68 = arith.mulf %67, %66 : vector<1x8xf32>
    %c0_40 = arith.constant 0 : index
    %c0_41 = arith.constant 0 : index
    %69 = vector.load %arg8[%c0_40, %c0_41] : memref<1x8xf32, #tpu.memory_space<vmem>>, vector<1x8xf32>
    %70 = arith.mulf %58, %68 : vector<1x8xf32>
    %71 = arith.subf %69, %70 : vector<1x8xf32>
    %72 = tpu.concatenate %68, %71 in 0 : vector<1x8xf32>, vector<1x8xf32> -> vector<2x8xf32>
    %c0_42 = arith.constant 0 : index
    %c0_43 = arith.constant 0 : index
    %73 = vector.load %arg10[%c0_42, %c0_43] : memref<8x128xf32, #tpu.memory_space<vmem>>, vector<8x128xf32>
    %cst_44 = arith.constant dense<0.000000e+00> : vector<2x128xf32>
    %74 = tpu.matmul %72, %73, %cst_44 {dimension_numbers = #tpu.dot_dimension_numbers<[1], [0], [0], [1], [0, 0, 1, 1], [], []>} : vector<2x8xf32>, vector<8x128xf32>, vector<2x128xf32> -> vector<2x128xf32>
    %75 = vector.extract_strided_slice %74 {offsets = [0, 0], sizes = [1, 128], strides = [1, 1]} : vector<2x128xf32> to vector<1x128xf32>
    %76 = vector.broadcast %75 : vector<1x128xf32> to vector<32x128xf32>
    %77 = arith.mulf %47, %76 : vector<32x128xf32>
    %78 = vector.extract_strided_slice %74 {offsets = [1, 0], sizes = [1, 128], strides = [1, 1]} : vector<2x128xf32> to vector<1x128xf32>
    %79 = vector.broadcast %78 : vector<1x128xf32> to vector<32x128xf32>
    %80 = arith.addf %77, %79 : vector<32x128xf32>
    %cst_45 = arith.constant 0.000000e+00 : f32
    %81 = vector.broadcast %cst_45 : f32 to vector<32x128xf32>
    %82 = arith.maximumf %80, %81 : vector<32x128xf32>
    %c0_46 = arith.constant 0 : index
    %c0_47 = arith.constant 0 : index
    %83 = vector.load %arg11[%c0_46, %c0_47] : memref<32x128xf32, #tpu.memory_space<vmem>>, vector<32x128xf32>
    tpu.vector_store %arg11[%c0_46, %c0_47], %82 {strides = array<i32>} : memref<32x128xf32, #tpu.memory_space<vmem>>, vector<32x128xf32>,
    return
  }
}

</mosaic_0001>

<llo_original>
// kernel: tpu_custom_call.1
$region0: #{tpu_custom_call.1}
  #allocation0 [shape = 'u32[]', space=smem, size = 0x4, offset = 0x4, fixed_abs, tag = 'smem constant byte address 0x4 - core index']
  #allocation1 [shape = 'u32[144,128]{1,0:T(1,128)}', space=vmem, size = 0x12000, scoped, tag = 'internal scratch']
  %s0 = inlined_call_operand.vmem [shape: f32[32,128], index: 0, kind: input, shape index: {}]
  %s1 = inlined_call_operand.hbm [shape: f32[384,128], index: 1, kind: input, shape index: {}]
  %s2 = inlined_call_operand.hbm [shape: f32[384,128], index: 2, kind: input, shape index: {}]
  %s3 = inlined_call_operand.vmem [shape: f32[32,32], index: 3, kind: input, shape index: {}]
  %s4 = inlined_call_operand.vmem [shape: f32[32,32], index: 4, kind: input, shape index: {}]
  %s5 = inlined_call_operand.vmem [shape: f32[1,8], index: 5, kind: input, shape index: {}]
  %s6 = inlined_call_operand.vmem [shape: f32[1,8], index: 6, kind: input, shape index: {}]
  %s7 = inlined_call_operand.vmem [shape: f32[1,8], index: 7, kind: input, shape index: {}]
  %s8 = inlined_call_operand.vmem [shape: f32[1,8], index: 8, kind: input, shape index: {}]
  %s9 = inlined_call_operand.vmem [shape: f32[128,8], index: 9, kind: input, shape index: {}]
  %s10 = inlined_call_operand.vmem [shape: f32[8,128], index: 10, kind: input, shape index: {}]
  %s11 = inlined_call_operand.hbm [shape: f32[32,128], index: 11, kind: output, shape index: {}]
  %s12 = sld [smem:[#allocation0]]
  $region62: #{tpu_custom_call.1} parent=0
    _
  %s14 = ssub.s32 1, %s12
  %s15 = scalar_select 0, %s14, %s12
  $region1: #{tpu_custom_call.1} parent=0
    #allocation2 [shape = 'u8[196608]{0}', space=vmem, size = 0x30000, scoped, tag = 'input window, operand 1, single buffered']
    #allocation3 [shape = 's32[1]{0}', space=sflag, size = 0x4, scoped, tag = 'scoped memory for tpu_custom_call.1']
    #allocation4 [shape = 's32[1]{0}', space=sflag, size = 0x4, scoped, tag = 'scoped memory for tpu_custom_call.1']
    #allocation5 [shape = 'u8[196608]{0}', space=vmem, size = 0x30000, scoped, tag = 'input window, operand 2, single buffered']
    #allocation6 [shape = 's32[1]{0}', space=sflag, size = 0x4, scoped, tag = 'scoped memory for tpu_custom_call.1']
    #allocation7 [shape = 'u8[16384]{0}', space=vmem, size = 0x4000, scoped, tag = 'output window, operand 0, single buffered']
    %16 = vsyncpa [#allocation3], 0
    %17 = vsyncpa [#allocation6], 0
    %18 = vsyncpa [#allocation4], 0
    // Predicated region
    $region2: #{tpu_custom_call.1} parent=1 // pred_check
      _
    $region3: #{tpu_custom_call.1} parent=1 // pred_check_branch
      %20 = sbr.rel (0) target = $region5
    $region4: #{tpu_custom_call.1} parent=1 // pred_region
      _
    $region5: #{tpu_custom_call.1} parent=1 // pred_fallthru
      _
    // Predicated region
    $region6: #{tpu_custom_call.1} parent=1 // pred_check
      _
    $region7: #{tpu_custom_call.1} parent=1 // pred_check_branch
      %22 = sbr.rel (0) target = $region9
    $region8: #{tpu_custom_call.1} parent=1 // pred_region
      %s24 = ssub.s32 6144, 6144
      %25 = vsyncadd [#allocation3], %s24
      %s26 = sshll.u32 [#allocation2], 4
      %s27 = int_to_ptr.vmem [resolvable:$true] %s26
      %32 = dma.hbm_to_vmem [thread:$0]  %s1, 6144, %s27, [#allocation3], 128, 128, 8
    $region9: #{tpu_custom_call.1} parent=1 // pred_fallthru
      _
    // Predicated region
    $region10: #{tpu_custom_call.1} parent=1 // pred_check
      _
    $region11: #{tpu_custom_call.1} parent=1 // pred_check_branch
      %34 = sbr.rel (0) target = $region13
    $region12: #{tpu_custom_call.1} parent=1 // pred_region
      %s36 = ssub.s32 6144, 6144
      %37 = vsyncadd [#allocation6], %s36
      %s38 = sshll.u32 [#allocation5], 4
      %s39 = int_to_ptr.vmem [resolvable:$true] %s38
      %44 = dma.hbm_to_vmem [thread:$0]  %s2, 6144, %s39, [#allocation6], 128, 128, 8
    $region13: #{tpu_custom_call.1} parent=1 // pred_fallthru
      _
    // Predicated region
    $region14: #{tpu_custom_call.1} parent=1 // pred_check
      _
    $region15: #{tpu_custom_call.1} parent=1 // pred_check_branch
      %46 = sbr.rel (0) target = $region17
    $region16: #{tpu_custom_call.1} parent=1 // pred_region
      _
    $region17: #{tpu_custom_call.1} parent=1 // pred_fallthru
      _
    // Predicated region
    $region18: #{tpu_custom_call.1} parent=1 // pred_check
      _
    $region19: #{tpu_custom_call.1} parent=1 // pred_check_branch
      %48 = sbr.rel (0) target = $region21
    $region20: #{tpu_custom_call.1} parent=1 // pred_region
      _
    $region21: #{tpu_custom_call.1} parent=1 // pred_fallthru
      _
    // Predicated region
    $region22: #{tpu_custom_call.1} parent=1 // pred_check
      _
    $region23: #{tpu_custom_call.1} parent=1 // pred_check_branch
      %50 = sbr.rel (0) target = $region25
    $region24: #{tpu_custom_call.1} parent=1 // pred_region
      _
    $region25: #{tpu_custom_call.1} parent=1 // pred_fallthru
      _
    // Predicated region
    $region26: #{tpu_custom_call.1} parent=1 // pred_check
      _
    $region27: #{tpu_custom_call.1} parent=1 // pred_check_branch
      %52 = sbr.rel (0) target = $region29
    $region28: #{tpu_custom_call.1} parent=1 // pred_region
      _
    $region29: #{tpu_custom_call.1} parent=1 // pred_fallthru
      _
    // Predicated region
    $region30: #{tpu_custom_call.1} parent=1 // pred_check
      _
    $region31: #{tpu_custom_call.1} parent=1 // pred_check_branch
      %54 = sbr.rel (0) target = $region33
    $region32: #{tpu_custom_call.1} parent=1 // pred_region
      _
    $region33: #{tpu_custom_call.1} parent=1 // pred_fallthru
      _
    // Predicated region
    $region34: #{tpu_custom_call.1} parent=1 // pred_check
      _
    $region35: #{tpu_custom_call.1} parent=1 // pred_check_branch
      %56 = sbr.rel (0) target = $region37
    $region36: #{tpu_custom_call.1} parent=1 // pred_region
      _
    $region37: #{tpu_custom_call.1} parent=1 // pred_fallthru
      _
    // Predicated region
    $region38: #{tpu_custom_call.1} parent=1 // pred_check
      _
    $region39: #{tpu_custom_call.1} parent=1 // pred_check_branch
      %58 = sbr.rel (0) target = $region41
    $region40: #{tpu_custom_call.1} parent=1 // pred_region
      _
    $region41: #{tpu_custom_call.1} parent=1 // pred_fallthru
      _
    // Predicated region
    $region42: #{tpu_custom_call.1} parent=1 // pred_check
      _
    $region43: #{tpu_custom_call.1} parent=1 // pred_check_branch
      %60 = sbr.rel (0) target = $region45
    $region44: #{tpu_custom_call.1} parent=1 // pred_region
      _
    $region45: #{tpu_custom_call.1} parent=1 // pred_fallthru
      _
    // Predicated region
    $region46: #{tpu_custom_call.1} parent=1 // pred_check
      _
    $region47: #{tpu_custom_call.1} parent=1 // pred_check_branch
      %62 = sbr.rel (0) target = $region49
    $region48: #{tpu_custom_call.1} parent=1 // pred_region
      %63 = dma.done [#allocation3], 6144
    $region49: #{tpu_custom_call.1} parent=1 // pred_fallthru
      _
    // Predicated region
    $region50: #{tpu_custom_call.1} parent=1 // pred_check
      _
    $region51: #{tpu_custom_call.1} parent=1 // pred_check_branch
      %65 = sbr.rel (0) target = $region53
    $region52: #{tpu_custom_call.1} parent=1 // pred_region
      %66 = dma.done [#allocation6], 6144
    $region53: #{tpu_custom_call.1} parent=1 // pred_fallthru
      _
    %v67 = vld [vmem:[%s3] sm:$0xff]
    %v68 = vld [vmem:[%s3 + $0x8] sm:$0xff]
    %v69 = vld [vmem:[%s3 + $0x10] sm:$0xff]
    %v70 = vld [vmem:[%s3 + $0x18] sm:$0xff]
    %v71 = vld [vmem:[%s4] sm:$0xff]
    %v72 = vld [vmem:[%s4 + $0x8] sm:$0xff]
    %v73 = vld [vmem:[%s4 + $0x10] sm:$0xff]
    %v74 = vld [vmem:[%s4 + $0x18] sm:$0xff]
    %v75 = vld [vmem:[%s0] sm:$0xff]
    %v76 = vld [vmem:[%s0 + $0x8] sm:$0xff]
    %v77 = vld [vmem:[%s0 + $0x10] sm:$0xff]
    %v78 = vld [vmem:[%s0 + $0x18] sm:$0xff]
    %vm79 = vcmask 261120
    %v81 = vsel %vm79, %v67, 0
    %v84 = vsel %vm79, %v68, 0
    %v87 = vsel %vm79, %v69, 0
    %v90 = vsel %vm79, %v70, 0
    %92 = vmatprep.subr.mxu0 0.0
    %93 = vmatpush1.msra.mxu0 %v75
    %94 = vmatprep.subr.mxu0 0.0
    %95 = vmatpush1.msra.mxu0 %v76
    %96 = vmatprep.subr.mxu0 0.0
    %97 = vmatpush1.msra.mxu0 %v77
    %98 = vmatprep.subr.mxu0 0.0
    %99 = vmatpush1.msra.mxu0 %v78
    %100 = vmatprep.subr.mxu0 0.0
    %101 = vmatpush1.msra.mxu0 0.0
    %102 = vmatprep.subr.mxu0 0.0
    %103 = vmatpush1.msra.mxu0 0.0
    %104 = vmatprep.subr.mxu0 0.0
    %105 = vmatpush1.msra.mxu0 0.0
    %106 = vmatprep.subr.mxu0 0.0
    %107 = vmatpush1.msra.mxu0 0.0
    %108 = vmatprep.subr.mxu0 0.0
    %109 = vmatpush1.msra.mxu0 0.0
    %110 = vmatprep.subr.mxu0 0.0
    %111 = vmatpush1.msra.mxu0 0.0
    %112 = vmatprep.subr.mxu0 0.0
    %113 = vmatpush1.msra.mxu0 0.0
    %114 = vmatprep.subr.mxu0 0.0
    %115 = vmatpush1.msra.mxu0 0.0
    %116 = vmatprep.subr.mxu0 0.0
    %117 = vmatpush1.msra.mxu0 0.0
    %118 = vmatprep.subr.mxu0 0.0
    %119 = vmatpush1.msra.mxu0 0.0
    %120 = vmatprep.subr.mxu0 0.0
    %121 = vmatpush1.msra.mxu0 0.0
    %122 = vmatprep.subr.mxu0 0.0
    %123 = vmatpush1.msra.mxu0 0.0
    %124 = vmatprep.subr.mxu0 0.0
    %125 = vmatpush1.msra.mxu0 0.0
    %126 = vmatprep.subr.mxu0 0.0
    %127 = vmatpush1.msra.mxu0 0.0
    %128 = vmatprep.subr.mxu0 0.0
    %129 = vmatpush1.msra.mxu0 0.0
    %130 = vmatprep.subr.mxu0 0.0
    %131 = vmatpush1.msra.mxu0 0.0
    %132 = vmatprep.subr.mxu0 0.0
    %133 = vmatpush1.msra.mxu0 0.0
    %134 = vmatprep.subr.mxu0 0.0
    %135 = vmatpush1.msra.mxu0 0.0
    %136 = vmatprep.subr.mxu0 0.0
    %137 = vmatpush1.msra.mxu0 0.0
    %138 = vmatprep.subr.mxu0 0.0
    %139 = vmatpush1.msra.mxu0 0.0
    %140 = vmatprep.subr.mxu0 0.0
    %141 = vmatpush1.msra.mxu0 0.0
    %142 = vmatprep.subr.mxu0 0.0
    %143 = vmatpush1.msra.mxu0 0.0
    %144 = vmatprep.subr.mxu0 0.0
    %145 = vmatpush1.msra.mxu0 0.0
    %146 = vmatprep.subr.mxu0 0.0
    %147 = vmatpush1.msra.mxu0 0.0
    %148 = vmatprep.subr.mxu0 0.0
    %149 = vmatpush1.msra.mxu0 0.0
    %150 = vmatprep.subr.mxu0 0.0
    %151 = vmatpush1.msra.mxu0 0.0
    %152 = vmatprep.subr.mxu0 0.0
    %153 = vmatpush1.msra.mxu0 0.0
    %154 = vmatprep.subr.mxu0 0.0
    %155 = vmatpush1.msra.mxu0 0.0
    %156 = vmatprep.mubr.f32.mxu0 0.0
    %157 = vmatmul.mubr.f32.gmra.mrb[0].mxu0 %v81
    %v158 = vpop.f32.mrb[0].mxu0
    %v159 = vadd.f32 0.0, %v158
    %v160 = vpop.f32.mrb[0].mxu0
    %161 = vmatprep.mubr.f32.mxu0 0.0
    %162 = vmatmul.mubr.f32.gmra.mrb[0].mxu0 %v84
    %v163 = vpop.f32.mrb[0].mxu0
    %v164 = vadd.f32 0.0, %v163
    %v165 = vpop.f32.mrb[0].mxu0
    %166 = vmatprep.mubr.f32.mxu0 0.0
    %167 = vmatmul.mubr.f32.gmra.mrb[0].mxu0 %v87
    %v168 = vpop.f32.mrb[0].mxu0
    %v169 = vadd.f32 0.0, %v168
    %v170 = vpop.f32.mrb[0].mxu0
    %171 = vmatprep.mubr.f32.mxu0 0.0
    %172 = vmatmul.mubr.f32.gmra.mrb[0].mxu0 %v90
    %v173 = vpop.f32.mrb[0].mxu0
    %v174 = vadd.f32 0.0, %v173
    %v175 = vpop.f32.mrb[0].mxu0
    %176 = vdwg.mxu0
    %v178 = vsel %vm79, %v71, 0
    %v181 = vsel %vm79, %v72, 0
    %v184 = vsel %vm79, %v73, 0
    %v187 = vsel %vm79, %v74, 0
    %189 = vmatprep.subr.mxu0 0.0
    %190 = vmatpush1.msra.mxu0 %v75
    %191 = vmatprep.subr.mxu0 0.0
    %192 = vmatpush1.msra.mxu0 %v76
    %193 = vmatprep.subr.mxu0 0.0
    %194 = vmatpush1.msra.mxu0 %v77
    %195 = vmatprep.subr.mxu0 0.0
    %196 = vmatpush1.msra.mxu0 %v78
    %197 = vmatprep.subr.mxu0 0.0
    %198 = vmatpush1.msra.mxu0 0.0
    %199 = vmatprep.subr.mxu0 0.0
    %200 = vmatpush1.msra.mxu0 0.0
    %201 = vmatprep.subr.mxu0 0.0
    %202 = vmatpush1.msra.mxu0 0.0
    %203 = vmatprep.subr.mxu0 0.0
    %204 = vmatpush1.msra.mxu0 0.0
    %205 = vmatprep.subr.mxu0 0.0
    %206 = vmatpush1.msra.mxu0 0.0
    %207 = vmatprep.subr.mxu0 0.0
    %208 = vmatpush1.msra.mxu0 0.0
    %209 = vmatprep.subr.mxu0 0.0
    %210 = vmatpush1.msra.mxu0 0.0
    %211 = vmatprep.subr.mxu0 0.0
    %212 = vmatpush1.msra.mxu0 0.0
    %213 = vmatprep.subr.mxu0 0.0
    %214 = vmatpush1.msra.mxu0 0.0
    %215 = vmatprep.subr.mxu0 0.0
    %216 = vmatpush1.msra.mxu0 0.0
    %217 = vmatprep.subr.mxu0 0.0
    %218 = vmatpush1.msra.mxu0 0.0
    %219 = vmatprep.subr.mxu0 0.0
    %220 = vmatpush1.msra.mxu0 0.0
    %221 = vmatprep.subr.mxu0 0.0
    %222 = vmatpush1.msra.mxu0 0.0
    %223 = vmatprep.subr.mxu0 0.0
    %224 = vmatpush1.msra.mxu0 0.0
    %225 = vmatprep.subr.mxu0 0.0
    %226 = vmatpush1.msra.mxu0 0.0
    %227 = vmatprep.subr.mxu0 0.0
    %228 = vmatpush1.msra.mxu0 0.0
    %229 = vmatprep.subr.mxu0 0.0
    %230 = vmatpush1.msra.mxu0 0.0
    %231 = vmatprep.subr.mxu0 0.0
    %232 = vmatpush1.msra.mxu0 0.0
    %233 = vmatprep.subr.mxu0 0.0
    %234 = vmatpush1.msra.mxu0 0.0
    %235 = vmatprep.subr.mxu0 0.0
    %236 = vmatpush1.msra.mxu0 0.0
    %237 = vmatprep.subr.mxu0 0.0
    %238 = vmatpush1.msra.mxu0 0.0
    %239 = vmatprep.subr.mxu0 0.0
    %240 = vmatpush1.msra.mxu0 0.0
    %241 = vmatprep.subr.mxu0 0.0
    %242 = vmatpush1.msra.mxu0 0.0
    %243 = vmatprep.subr.mxu0 0.0
    %244 = vmatpush1.msra.mxu0 0.0
    %245 = vmatprep.subr.mxu0 0.0
    %246 = vmatpush1.msra.mxu0 0.0
    %247 = vmatprep.subr.mxu0 0.0
    %248 = vmatpush1.msra.mxu0 0.0
    %249 = vmatprep.subr.mxu0 0.0
    %250 = vmatpush1.msra.mxu0 0.0
    %251 = vmatprep.subr.mxu0 0.0
    %252 = vmatpush1.msra.mxu0 0.0
    %253 = vmatprep.mubr.f32.mxu0 0.0
    %254 = vmatmul.mubr.f32.gmra.mrb[0].mxu0 %v178
    %v255 = vpop.f32.mrb[0].mxu0
    %v256 = vadd.f32 0.0, %v255
    %v257 = vpop.f32.mrb[0].mxu0
    %258 = vmatprep.mubr.f32.mxu0 0.0
    %259 = vmatmul.mubr.f32.gmra.mrb[0].mxu0 %v181
    %v260 = vpop.f32.mrb[0].mxu0
    %v261 = vadd.f32 0.0, %v260
    %v262 = vpop.f32.mrb[0].mxu0
    %263 = vmatprep.mubr.f32.mxu0 0.0
    %264 = vmatmul.mubr.f32.gmra.mrb[0].mxu0 %v184
    %v265 = vpop.f32.mrb[0].mxu0
    %v266 = vadd.f32 0.0, %v265
    %v267 = vpop.f32.mrb[0].mxu0
    %268 = vmatprep.mubr.f32.mxu0 0.0
    %269 = vmatmul.mubr.f32.gmra.mrb[0].mxu0 %v187
    %v270 = vpop.f32.mrb[0].mxu0
    %v271 = vadd.f32 0.0, %v270
    %v272 = vpop.f32.mrb[0].mxu0
    %273 = vdwg.mxu0
    %v274 = vld [vmem:[#allocation2] sm:$0xff]
    %v275 = vld [vmem:[#allocation2 + $0x8] sm:$0xff]
    %v276 = vld [vmem:[#allocation2 + $0x10] sm:$0xff]
    %v277 = vld [vmem:[#allocation2 + $0x18] sm:$0xff]
    %v278 = vld [vmem:[#allocation2 + $0x20] sm:$0xff]
    %v279 = vld [vmem:[#allocation2 + $0x28] sm:$0xff]
    %v280 = vld [vmem:[#allocation2 + $0x30] sm:$0xff]
    %v281 = vld [vmem:[#allocation2 + $0x38] sm:$0xff]
    %v282 = vld [vmem:[#allocation2 + $0x40] sm:$0xff]
    %v283 = vld [vmem:[#allocation2 + $0x48] sm:$0xff]
    %v284 = vld [vmem:[#allocation2 + $0x50] sm:$0xff]
    %v285 = vld [vmem:[#allocation2 + $0x58] sm:$0xff]
    %v286 = vld [vmem:[#allocation2 + $0x60] sm:$0xff]
    %v287 = vld [vmem:[#allocation2 + $0x68] sm:$0xff]
    %v288 = vld [vmem:[#allocation2 + $0x70] sm:$0xff]
    %v289 = vld [vmem:[#allocation2 + $0x78] sm:$0xff]
    %v290 = vld [vmem:[#allocation2 + $0x80] sm:$0xff]
    %v291 = vld [vmem:[#allocation2 + $0x88] sm:$0xff]
    %v292 = vld [vmem:[#allocation2 + $0x90] sm:$0xff]
    %v293 = vld [vmem:[#allocation2 + $0x98] sm:$0xff]
    %v294 = vld [vmem:[#allocation2 + $0xa0] sm:$0xff]
    %v295 = vld [vmem:[#allocation2 + $0xa8] sm:$0xff]
    %v296 = vld [vmem:[#allocation2 + $0xb0] sm:$0xff]
    %v297 = vld [vmem:[#allocation2 + $0xb8] sm:$0xff]
    %v298 = vld [vmem:[#allocation2 + $0xc0] sm:$0xff]
    %v299 = vld [vmem:[#allocation2 + $0xc8] sm:$0xff]
    %v300 = vld [vmem:[#allocation2 + $0xd0] sm:$0xff]
    %v301 = vld [vmem:[#allocation2 + $0xd8] sm:$0xff]
    %v302 = vld [vmem:[#allocation2 + $0xe0] sm:$0xff]
    %v303 = vld [vmem:[#allocation2 + $0xe8] sm:$0xff]
    %v304 = vld [vmem:[#allocation2 + $0xf0] sm:$0xff]
    %v305 = vld [vmem:[#allocation2 + $0xf8] sm:$0xff]
    %v306 = vld [vmem:[#allocation2 + $0x100] sm:$0xff]
    %v307 = vld [vmem:[#allocation2 + $0x108] sm:$0xff]
    %v308 = vld [vmem:[#allocation2 + $0x110] sm:$0xff]
    %v309 = vld [vmem:[#allocation2 + $0x118] sm:$0xff]
    %v310 = vld [vmem:[#allocation2 + $0x120] sm:$0xff]
    %v311 = vld [vmem:[#allocation2 + $0x128] sm:$0xff]
    %v312 = vld [vmem:[#allocation2 + $0x130] sm:$0xff]
    %v313 = vld [vmem:[#allocation2 + $0x138] sm:$0xff]
    %v314 = vld [vmem:[#allocation2 + $0x140] sm:$0xff]
    %v315 = vld [vmem:[#allocation2 + $0x148] sm:$0xff]
    %v316 = vld [vmem:[#allocation2 + $0x150] sm:$0xff]
    %v317 = vld [vmem:[#allocation2 + $0x158] sm:$0xff]
    %v318 = vld [vmem:[#allocation2 + $0x160] sm:$0xff]
    %v319 = vld [vmem:[#allocation2 + $0x168] sm:$0xff]
    %v320 = vld [vmem:[#allocation2 + $0x170] sm:$0xff]
    %v321 = vld [vmem:[#allocation2 + $0x178] sm:$0xff]
    %322 = vmatprep.subr.mxu0 0.0
    %323 = vmatpush1.msra.mxu0 %v274
    %324 = vmatprep.subr.mxu0 0.0
    %325 = vmatpush1.msra.mxu0 %v275
    %326 = vmatprep.subr.mxu0 0.0
    %327 = vmatpush1.msra.mxu0 %v276
    %328 = vmatprep.subr.mxu0 0.0
    %329 = vmatpush1.msra.mxu0 %v277
    %330 = vmatprep.subr.mxu0 0.0
    %331 = vmatpush1.msra.mxu0 %v278
    %332 = vmatprep.subr.mxu0 0.0
    %333 = vmatpush1.msra.mxu0 %v279
    %334 = vmatprep.subr.mxu0 0.0
    %335 = vmatpush1.msra.mxu0 %v280
    %336 = vmatprep.subr.mxu0 0.0
    %337 = vmatpush1.msra.mxu0 %v281
    %338 = vmatprep.subr.mxu0 0.0
    %339 = vmatpush1.msra.mxu0 %v282
    %340 = vmatprep.subr.mxu0 0.0
    %341 = vmatpush1.msra.mxu0 %v283
    %342 = vmatprep.subr.mxu0 0.0
    %343 = vmatpush1.msra.mxu0 %v284
    %344 = vmatprep.subr.mxu0 0.0
    %345 = vmatpush1.msra.mxu0 %v285
    %346 = vmatprep.subr.mxu0 0.0
    %347 = vmatpush1.msra.mxu0 %v286
    %348 = vmatprep.subr.mxu0 0.0
    %349 = vmatpush1.msra.mxu0 %v287
    %350 = vmatprep.subr.mxu0 0.0
    %351 = vmatpush1.msra.mxu0 %v288
    %352 = vmatprep.subr.mxu0 0.0
    %353 = vmatpush1.msra.mxu0 %v289
    %354 = vmatprep.subr.mxu0 0.0
    %355 = vmatpush1.msra.mxu0 %v290
    %356 = vmatprep.subr.mxu0 0.0
    %357 = vmatpush1.msra.mxu0 %v291
    %358 = vmatprep.subr.mxu0 0.0
    %359 = vmatpush1.msra.mxu0 %v292
    %360 = vmatprep.subr.mxu0 0.0
    %361 = vmatpush1.msra.mxu0 %v293
    %362 = vmatprep.subr.mxu0 0.0
    %363 = vmatpush1.msra.mxu0 %v294
    %364 = vmatprep.subr.mxu0 0.0
    %365 = vmatpush1.msra.mxu0 %v295
    %366 = vmatprep.subr.mxu0 0.0
    %367 = vmatpush1.msra.mxu0 %v296
    %368 = vmatprep.subr.mxu0 0.0
    %369 = vmatpush1.msra.mxu0 %v297
    %370 = vmatprep.subr.mxu0 0.0
    %371 = vmatpush1.msra.mxu0 %v298
    %372 = vmatprep.subr.mxu0 0.0
    %373 = vmatpush1.msra.mxu0 %v299
    %374 = vmatprep.subr.mxu0 0.0
    %375 = vmatpush1.msra.mxu0 %v300
    %376 = vmatprep.subr.mxu0 0.0
    %377 = vmatpush1.msra.mxu0 %v301
    %378 = vmatprep.subr.mxu0 0.0
    %379 = vmatpush1.msra.mxu0 %v302
    %380 = vmatprep.subr.mxu0 0.0
    %381 = vmatpush1.msra.mxu0 %v303
    %382 = vmatprep.subr.mxu0 0.0
    %383 = vmatpush1.msra.mxu0 %v304
    %384 = vmatprep.subr.mxu0 0.0
    %385 = vmatpush1.msra.mxu0 %v305
    %386 = vmatprep.mubr.f32.mxu0 %v75
    %387 = vmatmul.mubr.f32.gmra.mrb[0].mxu0 %v159
    %v388 = vpop.f32.mrb[0].mxu0
    %v389 = vadd.f32 0.0, %v388
    %v390 = vpop.f32.mrb[0].mxu0
    %391 = vmatprep.mubr.f32.mxu0 %v76
    %392 = vmatmul.mubr.f32.gmra.mrb[0].mxu0 %v164
    %v393 = vpop.f32.mrb[0].mxu0
    %v394 = vadd.f32 0.0, %v393
    %v395 = vpop.f32.mrb[0].mxu0
    %396 = vmatprep.mubr.f32.mxu0 %v77
    %397 = vmatmul.mubr.f32.gmra.mrb[0].mxu0 %v169
    %v398 = vpop.f32.mrb[0].mxu0
    %v399 = vadd.f32 0.0, %v398
    %v400 = vpop.f32.mrb[0].mxu0
    %401 = vmatprep.mubr.f32.mxu0 %v78
    %402 = vmatmul.mubr.f32.gmra.mrb[0].mxu0 %v174
    %v403 = vpop.f32.mrb[0].mxu0
    %v404 = vadd.f32 0.0, %v403
    %v405 = vpop.f32.mrb[0].mxu0
    %406 = vdwg.mxu0
    %407 = vmatprep.subr.mxu0 0.0
    %408 = vmatpush1.msra.mxu0 %v306
    %409 = vmatprep.subr.mxu0 0.0
    %410 = vmatpush1.msra.mxu0 %v307
    %411 = vmatprep.subr.mxu0 0.0
    %412 = vmatpush1.msra.mxu0 %v308
    %413 = vmatprep.subr.mxu0 0.0
    %414 = vmatpush1.msra.mxu0 %v309
    %415 = vmatprep.subr.mxu0 0.0
    %416 = vmatpush1.msra.mxu0 %v310
    %417 = vmatprep.subr.mxu0 0.0
    %418 = vmatpush1.msra.mxu0 %v311
    %419 = vmatprep.subr.mxu0 0.0
    %420 = vmatpush1.msra.mxu0 %v312
    %421 = vmatprep.subr.mxu0 0.0
    %422 = vmatpush1.msra.mxu0 %v313
    %423 = vmatprep.subr.mxu0 0.0
    %424 = vmatpush1.msra.mxu0 %v314
    %425 = vmatprep.subr.mxu0 0.0
    %426 = vmatpush1.msra.mxu0 %v315
    %427 = vmatprep.subr.mxu0 0.0
    %428 = vmatpush1.msra.mxu0 %v316
    %429 = vmatprep.subr.mxu0 0.0
    %430 = vmatpush1.msra.mxu0 %v317
    %431 = vmatprep.subr.mxu0 0.0
    %432 = vmatpush1.msra.mxu0 %v318
    %433 = vmatprep.subr.mxu0 0.0
    %434 = vmatpush1.msra.mxu0 %v319
    %435 = vmatprep.subr.mxu0 0.0
    %436 = vmatpush1.msra.mxu0 %v320
    %437 = vmatprep.subr.mxu0 0.0
    %438 = vmatpush1.msra.mxu0 %v321
    %439 = vmatprep.subr.mxu0 0.0
    %440 = vmatpush1.msra.mxu0 0.0
    %441 = vmatprep.subr.mxu0 0.0
    %442 = vmatpush1.msra.mxu0 0.0
    %443 = vmatprep.subr.mxu0 0.0
    %444 = vmatpush1.msra.mxu0 0.0
    %445 = vmatprep.subr.mxu0 0.0
    %446 = vmatpush1.msra.mxu0 0.0
    %447 = vmatprep.subr.mxu0 0.0
    %448 = vmatpush1.msra.mxu0 0.0
    %449 = vmatprep.subr.mxu0 0.0
    %450 = vmatpush1.msra.mxu0 0.0
    %451 = vmatprep.subr.mxu0 0.0
    %452 = vmatpush1.msra.mxu0 0.0
    %453 = vmatprep.subr.mxu0 0.0
    %454 = vmatpush1.msra.mxu0 0.0
    %455 = vmatprep.subr.mxu0 0.0
    %456 = vmatpush1.msra.mxu0 0.0
    %457 = vmatprep.subr.mxu0 0.0
    %458 = vmatpush1.msra.mxu0 0.0
    %459 = vmatprep.subr.mxu0 0.0
    %460 = vmatpush1.msra.mxu0 0.0
    %461 = vmatprep.subr.mxu0 0.0
    %462 = vmatpush1.msra.mxu0 0.0
    %463 = vmatprep.subr.mxu0 0.0
    %464 = vmatpush1.msra.mxu0 0.0
    %465 = vmatprep.subr.mxu0 0.0
    %466 = vmatpush1.msra.mxu0 0.0
    %467 = vmatprep.subr.mxu0 0.0
    %468 = vmatpush1.msra.mxu0 0.0
    %469 = vmatprep.subr.mxu0 0.0
    %470 = vmatpush1.msra.mxu0 0.0
    %471 = vmatprep.mubr.f32.mxu0 0.0
    %472 = vmatmul.mubr.f32.gmra.mrb[0].mxu0 %v256
    %v473 = vpop.f32.mrb[0].mxu0
    %v474 = vadd.f32 %v389, %v473
    %v475 = vpop.f32.mrb[0].mxu0
    %476 = vmatprep.mubr.f32.mxu0 0.0
    %477 = vmatmul.mubr.f32.gmra.mrb[0].mxu0 %v261
    %v478 = vpop.f32.mrb[0].mxu0
    %v479 = vadd.f32 %v394, %v478
    %v480 = vpop.f32.mrb[0].mxu0
    %481 = vmatprep.mubr.f32.mxu0 0.0
    %482 = vmatmul.mubr.f32.gmra.mrb[0].mxu0 %v266
    %v483 = vpop.f32.mrb[0].mxu0
    %v484 = vadd.f32 %v399, %v483
    %v485 = vpop.f32.mrb[0].mxu0
    %486 = vmatprep.mubr.f32.mxu0 0.0
    %487 = vmatmul.mubr.f32.gmra.mrb[0].mxu0 %v271
    %v488 = vpop.f32.mrb[0].mxu0
    %v489 = vadd.f32 %v404, %v488
    %v490 = vpop.f32.mrb[0].mxu0
    %491 = vdwg.mxu0
    %v492 = vadd.f32 %v474, %v479
    %v493 = vadd.f32 %v492, %v484
    %v494 = vadd.f32 %v493, %v489
    %v495 = vrot.slane %v494, 4
    %v496 = vadd.f32 %v494, %v495
    %v497 = vrot.slane %v496, 2
    %v498 = vadd.f32 %v496, %v497
    %v499 = vrot.slane %v498, 1
    %v500 = vadd.f32 %v498, %v499
    %v501 = vmul.f32 %v474, %v474
    %v502 = vmul.f32 %v479, %v479
    %v503 = vmul.f32 %v484, %v484
    %v504 = vmul.f32 %v489, %v489
    %v505 = vadd.f32 %v501, %v502
    %v506 = vadd.f32 %v505, %v503
    %v507 = vadd.f32 %v506, %v504
    %v508 = vrot.slane %v507, 4
    %v509 = vadd.f32 %v507, %v508
    %v510 = vrot.slane %v509, 2
    %v511 = vadd.f32 %v509, %v510
    %v512 = vrot.slane %v511, 1
    %v513 = vadd.f32 %v511, %v512
    %vm514 = vcmask 1040384
    %v515 = vsel %vm514, %v500, %v513
    %v516 = vld [vmem:[%s9] sm:$0xff]
    %v517 = vld [vmem:[%s9 + $0x8] sm:$0xff]
    %v518 = vld [vmem:[%s9 + $0x10] sm:$0xff]
    %v519 = vld [vmem:[%s9 + $0x18] sm:$0xff]
    %v520 = vld [vmem:[%s9 + $0x20] sm:$0xff]
    %v521 = vld [vmem:[%s9 + $0x28] sm:$0xff]
    %v522 = vld [vmem:[%s9 + $0x30] sm:$0xff]
    %v523 = vld [vmem:[%s9 + $0x38] sm:$0xff]
    %v524 = vld [vmem:[%s9 + $0x40] sm:$0xff]
    %v525 = vld [vmem:[%s9 + $0x48] sm:$0xff]
    %v526 = vld [vmem:[%s9 + $0x50] sm:$0xff]
    %v527 = vld [vmem:[%s9 + $0x58] sm:$0xff]
    %v528 = vld [vmem:[%s9 + $0x60] sm:$0xff]
    %v529 = vld [vmem:[%s9 + $0x68] sm:$0xff]
    %v530 = vld [vmem:[%s9 + $0x70] sm:$0xff]
    %v531 = vld [vmem:[%s9 + $0x78] sm:$0xff]
    %532 = vmatprep.subr.mxu0 0.0
    %533 = vmatpush1.msra.mxu0 %v516
    %534 = vmatprep.subr.mxu0 0.0
    %535 = vmatpush1.msra.mxu0 %v517
    %536 = vmatprep.subr.mxu0 0.0
    %537 = vmatpush1.msra.mxu0 %v518
    %538 = vmatprep.subr.mxu0 0.0
    %539 = vmatpush1.msra.mxu0 %v519
    %540 = vmatprep.subr.mxu0 0.0
    %541 = vmatpush1.msra.mxu0 %v520
    %542 = vmatprep.subr.mxu0 0.0
    %543 = vmatpush1.msra.mxu0 %v521
    %544 = vmatprep.subr.mxu0 0.0
    %545 = vmatpush1.msra.mxu0 %v522
    %546 = vmatprep.subr.mxu0 0.0
    %547 = vmatpush1.msra.mxu0 %v523
    %548 = vmatprep.subr.mxu0 0.0
    %549 = vmatpush1.msra.mxu0 %v524
    %550 = vmatprep.subr.mxu0 0.0
    %551 = vmatpush1.msra.mxu0 %v525
    %552 = vmatprep.subr.mxu0 0.0
    %553 = vmatpush1.msra.mxu0 %v526
    %554 = vmatprep.subr.mxu0 0.0
    %555 = vmatpush1.msra.mxu0 %v527
    %556 = vmatprep.subr.mxu0 0.0
    %557 = vmatpush1.msra.mxu0 %v528
    %558 = vmatprep.subr.mxu0 0.0
    %559 = vmatpush1.msra.mxu0 %v529
    %560 = vmatprep.subr.mxu0 0.0
    %561 = vmatpush1.msra.mxu0 %v530
    %562 = vmatprep.subr.mxu0 0.0
    %563 = vmatpush1.msra.mxu0 %v531
    %564 = vmatprep.subr.mxu0 0.0
    %565 = vmatpush1.msra.mxu0 0.0
    %566 = vmatprep.subr.mxu0 0.0
    %567 = vmatpush1.msra.mxu0 0.0
    %568 = vmatprep.subr.mxu0 0.0
    %569 = vmatpush1.msra.mxu0 0.0
    %570 = vmatprep.subr.mxu0 0.0
    %571 = vmatpush1.msra.mxu0 0.0
    %572 = vmatprep.subr.mxu0 0.0
    %573 = vmatpush1.msra.mxu0 0.0
    %574 = vmatprep.subr.mxu0 0.0
    %575 = vmatpush1.msra.mxu0 0.0
    %576 = vmatprep.subr.mxu0 0.0
    %577 = vmatpush1.msra.mxu0 0.0
    %578 = vmatprep.subr.mxu0 0.0
    %579 = vmatpush1.msra.mxu0 0.0
    %580 = vmatprep.subr.mxu0 0.0
    %581 = vmatpush1.msra.mxu0 0.0
    %582 = vmatprep.subr.mxu0 0.0
    %583 = vmatpush1.msra.mxu0 0.0
    %584 = vmatprep.subr.mxu0 0.0
    %585 = vmatpush1.msra.mxu0 0.0
    %586 = vmatprep.subr.mxu0 0.0
    %587 = vmatpush1.msra.mxu0 0.0
    %588 = vmatprep.subr.mxu0 0.0
    %589 = vmatpush1.msra.mxu0 0.0
    %590 = vmatprep.subr.mxu0 0.0
    %591 = vmatpush1.msra.mxu0 0.0
    %592 = vmatprep.subr.mxu0 0.0
    %593 = vmatpush1.msra.mxu0 0.0
    %594 = vmatprep.subr.mxu0 0.0
    %595 = vmatpush1.msra.mxu0 0.0
    %596 = vmatprep.mubr.f32.mxu0 0.0
    %597 = vmatmul.mubr.f32.gmra.mrb[0].mxu0 %v515
    %v598 = vpop.f32.mrb[0].mxu0
    %v599 = vadd.f32 0.0, %v598
    %v600 = vpop.f32.mrb[0].mxu0
    %601 = vdwg.mxu0
    %v602 = vmul.f32 %v599, 0.001953125
    %v603 = vmul.f32 %v602, %v602
    %v605 = vrot.slane %v603, 7
    %v607 = vsub.f32 %v602, %v605
    %v608 = vadd.f32 %v607, 1e-05
    %v609 = vrsqrt.pop %v608
    %v610 = vld [vmem:[%s5] sm:$0x1]
    %v613 = vunpack.c.l.s4 1966171168
    %v614 = vunpack.c.0.s8 %v613
    %v615 = vlaneseq
    %v616 = vshrl.u32 %v615, 7
    %v617 = vsub.s32 %v614, %v616
    %v618 = vrot.slane %v609, %v617
    %v619 = vcombine.high %v618, %v618
    %v621 = vunpack.c.l.s4 1966171168
    %v622 = vunpack.c.0.s8 %v621
    %v623 = vlaneseq
    %v624 = vshrl.u32 %v623, 7
    %v625 = vsub.s32 %v622, %v624
    %v626 = vrot.slane %v619, %v625
    %v628 = vmul.f32 %v610, %v626
    %v629 = vld [vmem:[%s6] sm:$0x1]
    %v630 = vmul.f32 %v602, %v628
    %v631 = vsub.f32 %v629, %v630
    %v633 = vlaneseq
    %v634 = vshrl.u32 %v633, 7
    %v635 = vsub.s32 0, %v634
    %v636 = vrot.slane %v631, %v635
    %v638 = vsel %vm514, %v628, %v636
    %v639 = vld [vmem:[%s10] sm:$0xff]
    %vm640 = vcmask 64512
    %v642 = vsel %vm640, %v638, 0
    %644 = vmatprep.subr.mxu0 0.0
    %645 = vmatpush1.msra.mxu0 %v639
    %646 = vmatprep.subr.mxu0 0.0
    %647 = vmatpush1.msra.mxu0 0.0
    %648 = vmatprep.subr.mxu0 0.0
    %649 = vmatpush1.msra.mxu0 0.0
    %650 = vmatprep.subr.mxu0 0.0
    %651 = vmatpush1.msra.mxu0 0.0
    %652 = vmatprep.subr.mxu0 0.0
    %653 = vmatpush1.msra.mxu0 0.0
    %654 = vmatprep.subr.mxu0 0.0
    %655 = vmatpush1.msra.mxu0 0.0
    %656 = vmatprep.subr.mxu0 0.0
    %657 = vmatpush1.msra.mxu0 0.0
    %658 = vmatprep.subr.mxu0 0.0
    %659 = vmatpush1.msra.mxu0 0.0
    %660 = vmatprep.subr.mxu0 0.0
    %661 = vmatpush1.msra.mxu0 0.0
    %662 = vmatprep.subr.mxu0 0.0
    %663 = vmatpush1.msra.mxu0 0.0
    %664 = vmatprep.subr.mxu0 0.0
    %665 = vmatpush1.msra.mxu0 0.0
    %666 = vmatprep.subr.mxu0 0.0
    %667 = vmatpush1.msra.mxu0 0.0
    %668 = vmatprep.subr.mxu0 0.0
    %669 = vmatpush1.msra.mxu0 0.0
    %670 = vmatprep.subr.mxu0 0.0
    %671 = vmatpush1.msra.mxu0 0.0
    %672 = vmatprep.subr.mxu0 0.0
    %673 = vmatpush1.msra.mxu0 0.0
    %674 = vmatprep.subr.mxu0 0.0
    %675 = vmatpush1.msra.mxu0 0.0
    %676 = vmatprep.subr.mxu0 0.0
    %677 = vmatpush1.msra.mxu0 0.0
    %678 = vmatprep.subr.mxu0 0.0
    %679 = vmatpush1.msra.mxu0 0.0
    %680 = vmatprep.subr.mxu0 0.0
    %681 = vmatpush1.msra.mxu0 0.0
    %682 = vmatprep.subr.mxu0 0.0
    %683 = vmatpush1.msra.mxu0 0.0
    %684 = vmatprep.subr.mxu0 0.0
    %685 = vmatpush1.msra.mxu0 0.0
    %686 = vmatprep.subr.mxu0 0.0
    %687 = vmatpush1.msra.mxu0 0.0
    %688 = vmatprep.subr.mxu0 0.0
    %689 = vmatpush1.msra.mxu0 0.0
    %690 = vmatprep.subr.mxu0 0.0
    %691 = vmatpush1.msra.mxu0 0.0
    %692 = vmatprep.subr.mxu0 0.0
    %693 = vmatpush1.msra.mxu0 0.0
    %694 = vmatprep.subr.mxu0 0.0
    %695 = vmatpush1.msra.mxu0 0.0
    %696 = vmatprep.subr.mxu0 0.0
    %697 = vmatpush1.msra.mxu0 0.0
    %698 = vmatprep.subr.mxu0 0.0
    %699 = vmatpush1.msra.mxu0 0.0
    %700 = vmatprep.subr.mxu0 0.0
    %701 = vmatpush1.msra.mxu0 0.0
    %702 = vmatprep.subr.mxu0 0.0
    %703 = vmatpush1.msra.mxu0 0.0
    %704 = vmatprep.subr.mxu0 0.0
    %705 = vmatpush1.msra.mxu0 0.0
    %706 = vmatprep.subr.mxu0 0.0
    %707 = vmatpush1.msra.mxu0 0.0
    %708 = vmatprep.mubr.f32.mxu0 0.0
    %709 = vmatmul.mubr.f32.gmra.mrb[0].mxu0 %v642
    %v710 = vpop.f32.mrb[0].mxu0
    %v711 = vadd.f32 0.0, %v710
    %v712 = vpop.f32.mrb[0].mxu0
    %713 = vdwg.mxu0
    %v714 = vlaneseq
    %v715 = vshrl.u32 %v714, 7
    %v716 = vsub.s32 0, %v715
    %v717 = vrot.slane %v711, %v716
    %v718 = vmul.f32 %v474, %v717
    %v719 = vmul.f32 %v479, %v717
    %v720 = vmul.f32 %v484, %v717
    %v721 = vmul.f32 %v489, %v717
    %v722 = vlaneseq
    %v723 = vshrl.u32 %v722, 7
    %v724 = vsub.s32 1, %v723
    %v725 = vrot.slane %v711, %v724
    %v726 = vadd.f32 %v718, %v725
    %v727 = vadd.f32 %v719, %v725
    %v728 = vadd.f32 %v720, %v725
    %v729 = vadd.f32 %v721, %v725
    %v730 = vmax.f32 %v726, 0.0
    %v731 = vmax.f32 %v727, 0.0
    %v732 = vmax.f32 %v728, 0.0
    %v733 = vmax.f32 %v729, 0.0
    %734 = vmatprep.subr.mxu0 0.0
    %735 = vmatpush1.msra.mxu0 %v730
    %736 = vmatprep.subr.mxu0 0.0
    %737 = vmatpush1.msra.mxu0 %v731
    %738 = vmatprep.subr.mxu0 0.0
    %739 = vmatpush1.msra.mxu0 %v732
    %740 = vmatprep.subr.mxu0 0.0
    %741 = vmatpush1.msra.mxu0 %v733
    %742 = vmatprep.subr.mxu0 0.0
    %743 = vmatpush1.msra.mxu0 0.0
    %744 = vmatprep.subr.mxu0 0.0
    %745 = vmatpush1.msra.mxu0 0.0
    %746 = vmatprep.subr.mxu0 0.0
    %747 = vmatpush1.msra.mxu0 0.0
    %748 = vmatprep.subr.mxu0 0.0
    %749 = vmatpush1.msra.mxu0 0.0
    %750 = vmatprep.subr.mxu0 0.0
    %751 = vmatpush1.msra.mxu0 0.0
    %752 = vmatprep.subr.mxu0 0.0
    %753 = vmatpush1.msra.mxu0 0.0
    %754 = vmatprep.subr.mxu0 0.0
    %755 = vmatpush1.msra.mxu0 0.0
    %756 = vmatprep.subr.mxu0 0.0
    %757 = vmatpush1.msra.mxu0 0.0
    %758 = vmatprep.subr.mxu0 0.0
    %759 = vmatpush1.msra.mxu0 0.0
    %760 = vmatprep.subr.mxu0 0.0
    %761 = vmatpush1.msra.mxu0 0.0
    %762 = vmatprep.subr.mxu0 0.0
    %763 = vmatpush1.msra.mxu0 0.0
    %764 = vmatprep.subr.mxu0 0.0
    %765 = vmatpush1.msra.mxu0 0.0
    %766 = vmatprep.subr.mxu0 0.0
    %767 = vmatpush1.msra.mxu0 0.0
    %768 = vmatprep.subr.mxu0 0.0
    %769 = vmatpush1.msra.mxu0 0.0
    %770 = vmatprep.subr.mxu0 0.0
    %771 = vmatpush1.msra.mxu0 0.0
    %772 = vmatprep.subr.mxu0 0.0
    %773 = vmatpush1.msra.mxu0 0.0
    %774 = vmatprep.subr.mxu0 0.0
    %775 = vmatpush1.msra.mxu0 0.0
    %776 = vmatprep.subr.mxu0 0.0
    %777 = vmatpush1.msra.mxu0 0.0
    %778 = vmatprep.subr.mxu0 0.0
    %779 = vmatpush1.msra.mxu0 0.0
    %780 = vmatprep.subr.mxu0 0.0
    %781 = vmatpush1.msra.mxu0 0.0
    %782 = vmatprep.subr.mxu0 0.0
    %783 = vmatpush1.msra.mxu0 0.0
    %784 = vmatprep.subr.mxu0 0.0
    %785 = vmatpush1.msra.mxu0 0.0
    %786 = vmatprep.subr.mxu0 0.0
    %787 = vmatpush1.msra.mxu0 0.0
    %788 = vmatprep.subr.mxu0 0.0
    %789 = vmatpush1.msra.mxu0 0.0
    %790 = vmatprep.subr.mxu0 0.0
    %791 = vmatpush1.msra.mxu0 0.0
    %792 = vmatprep.subr.mxu0 0.0
    %793 = vmatpush1.msra.mxu0 0.0
    %794 = vmatprep.subr.mxu0 0.0
    %795 = vmatpush1.msra.mxu0 0.0
    %796 = vmatprep.subr.mxu0 0.0
    %797 = vmatpush1.msra.mxu0 0.0
    %798 = vmatprep.mubr.f32.mxu0 0.0
    %799 = vmatmul.mubr.f32.gmra.mrb[0].mxu0 %v81
    %v800 = vpop.f32.mrb[0].mxu0
    %v801 = vadd.f32 0.0, %v800
    %v802 = vpop.f32.mrb[0].mxu0
    %803 = vmatprep.mubr.f32.mxu0 0.0
    %804 = vmatmul.mubr.f32.gmra.mrb[0].mxu0 %v84
    %v805 = vpop.f32.mrb[0].mxu0
    %v806 = vadd.f32 0.0, %v805
    %v807 = vpop.f32.mrb[0].mxu0
    %808 = vmatprep.mubr.f32.mxu0 0.0
    %809 = vmatmul.mubr.f32.gmra.mrb[0].mxu0 %v87
    %v810 = vpop.f32.mrb[0].mxu0
    %v811 = vadd.f32 0.0, %v810
    %v812 = vpop.f32.mrb[0].mxu0
    %813 = vmatprep.mubr.f32.mxu0 0.0
    %814 = vmatmul.mubr.f32.gmra.mrb[0].mxu0 %v90
    %v815 = vpop.f32.mrb[0].mxu0
    %v816 = vadd.f32 0.0, %v815
    %v817 = vpop.f32.mrb[0].mxu0
    %818 = vdwg.mxu0
    %819 = vmatprep.subr.mxu0 0.0
    %820 = vmatpush1.msra.mxu0 %v730
    %821 = vmatprep.subr.mxu0 0.0
    %822 = vmatpush1.msra.mxu0 %v731
    %823 = vmatprep.subr.mxu0 0.0
    %824 = vmatpush1.msra.mxu0 %v732
    %825 = vmatprep.subr.mxu0 0.0
    %826 = vmatpush1.msra.mxu0 %v733
    %827 = vmatprep.subr.mxu0 0.0
    %828 = vmatpush1.msra.mxu0 0.0
    %829 = vmatprep.subr.mxu0 0.0
    %830 = vmatpush1.msra.mxu0 0.0
    %831 = vmatprep.subr.mxu0 0.0
    %832 = vmatpush1.msra.mxu0 0.0
    %833 = vmatprep.subr.mxu0 0.0
    %834 = vmatpush1.msra.mxu0 0.0
    %835 = vmatprep.subr.mxu0 0.0
    %836 = vmatpush1.msra.mxu0 0.0
    %837 = vmatprep.subr.mxu0 0.0
    %838 = vmatpush1.msra.mxu0 0.0
    %839 = vmatprep.subr.mxu0 0.0
    %840 = vmatpush1.msra.mxu0 0.0
    %841 = vmatprep.subr.mxu0 0.0
    %842 = vmatpush1.msra.mxu0 0.0
    %843 = vmatprep.subr.mxu0 0.0
    %844 = vmatpush1.msra.mxu0 0.0
    %845 = vmatprep.subr.mxu0 0.0
    %846 = vmatpush1.msra.mxu0 0.0
    %847 = vmatprep.subr.mxu0 0.0
    %848 = vmatpush1.msra.mxu0 0.0
    %849 = vmatprep.subr.mxu0 0.0
    %850 = vmatpush1.msra.mxu0 0.0
    %851 = vmatprep.subr.mxu0 0.0
    %852 = vmatpush1.msra.mxu0 0.0
    %853 = vmatprep.subr.mxu0 0.0
    %854 = vmatpush1.msra.mxu0 0.0
    %855 = vmatprep.subr.mxu0 0.0
    %856 = vmatpush1.msra.mxu0 0.0
    %857 = vmatprep.subr.mxu0 0.0
    %858 = vmatpush1.msra.mxu0 0.0
    %859 = vmatprep.subr.mxu0 0.0
    %860 = vmatpush1.msra.mxu0 0.0
    %861 = vmatprep.subr.mxu0 0.0
    %862 = vmatpush1.msra.mxu0 0.0
    %863 = vmatprep.subr.mxu0 0.0
    %864 = vmatpush1.msra.mxu0 0.0
    %865 = vmatprep.subr.mxu0 0.0
    %866 = vmatpush1.msra.mxu0 0.0
    %867 = vmatprep.subr.mxu0 0.0
    %868 = vmatpush1.msra.mxu0 0.0
    %869 = vmatprep.subr.mxu0 0.0
    %870 = vmatpush1.msra.mxu0 0.0
    %871 = vmatprep.subr.mxu0 0.0
    %872 = vmatpush1.msra.mxu0 0.0
    %873 = vmatprep.subr.mxu0 0.0
    %874 = vmatpush1.msra.mxu0 0.0
    %875 = vmatprep.subr.mxu0 0.0
    %876 = vmatpush1.msra.mxu0 0.0
    %877 = vmatprep.subr.mxu0 0.0
    %878 = vmatpush1.msra.mxu0 0.0
    %879 = vmatprep.subr.mxu0 0.0
    %880 = vmatpush1.msra.mxu0 0.0
    %881 = vmatprep.subr.mxu0 0.0
    %882 = vmatpush1.msra.mxu0 0.0
    %883 = vmatprep.mubr.f32.mxu0 0.0
    %884 = vmatmul.mubr.f32.gmra.mrb[0].mxu0 %v178
    %v885 = vpop.f32.mrb[0].mxu0
    %v886 = vadd.f32 0.0, %v885
    %v887 = vpop.f32.mrb[0].mxu0
    %888 = vmatprep.mubr.f32.mxu0 0.0
    %889 = vmatmul.mubr.f32.gmra.mrb[0].mxu0 %v181
    %v890 = vpop.f32.mrb[0].mxu0
    %v891 = vadd.f32 0.0, %v890
    %v892 = vpop.f32.mrb[0].mxu0
    %893 = vmatprep.mubr.f32.mxu0 0.0
    %894 = vmatmul.mubr.f32.gmra.mrb[0].mxu0 %v184
    %v895 = vpop.f32.mrb[0].mxu0
    %v896 = vadd.f32 0.0, %v895
    %v897 = vpop.f32.mrb[0].mxu0
    %898 = vmatprep.mubr.f32.mxu0 0.0
    %899 = vmatmul.mubr.f32.gmra.mrb[0].mxu0 %v187
    %v900 = vpop.f32.mrb[0].mxu0
    %v901 = vadd.f32 0.0, %v900
    %v902 = vpop.f32.mrb[0].mxu0
    %903 = vdwg.mxu0
    %v904 = vld [vmem:[#allocation5] sm:$0xff]
    %v905 = vld [vmem:[#allocation5 + $0x8] sm:$0xff]
    %v906 = vld [vmem:[#allocation5 + $0x10] sm:$0xff]
    %v907 = vld [vmem:[#allocation5 + $0x18] sm:$0xff]
    %v908 = vld [vmem:[#allocation5 + $0x20] sm:$0xff]
    %v909 = vld [vmem:[#allocation5 + $0x28] sm:$0xff]
    %v910 = vld [vmem:[#allocation5 + $0x30] sm:$0xff]
    %v911 = vld [vmem:[#allocation5 + $0x38] sm:$0xff]
    %v912 = vld [vmem:[#allocation5 + $0x40] sm:$0xff]
    %v913 = vld [vmem:[#allocation5 + $0x48] sm:$0xff]
    %v914 = vld [vmem:[#allocation5 + $0x50] sm:$0xff]
    %v915 = vld [vmem:[#allocation5 + $0x58] sm:$0xff]
    %v916 = vld [vmem:[#allocation5 + $0x60] sm:$0xff]
    %v917 = vld [vmem:[#allocation5 + $0x68] sm:$0xff]
    %v918 = vld [vmem:[#allocation5 + $0x70] sm:$0xff]
    %v919 = vld [vmem:[#allocation5 + $0x78] sm:$0xff]
    %v920 = vld [vmem:[#allocation5 + $0x80] sm:$0xff]
    %v921 = vld [vmem:[#allocation5 + $0x88] sm:$0xff]
    %v922 = vld [vmem:[#allocation5 + $0x90] sm:$0xff]
    %v923 = vld [vmem:[#allocation5 + $0x98] sm:$0xff]
    %v924 = vld [vmem:[#allocation5 + $0xa0] sm:$0xff]
    %v925 = vld [vmem:[#allocation5 + $0xa8] sm:$0xff]
    %v926 = vld [vmem:[#allocation5 + $0xb0] sm:$0xff]
    %v927 = vld [vmem:[#allocation5 + $0xb8] sm:$0xff]
    %v928 = vld [vmem:[#allocation5 + $0xc0] sm:$0xff]
    %v929 = vld [vmem:[#allocation5 + $0xc8] sm:$0xff]
    %v930 = vld [vmem:[#allocation5 + $0xd0] sm:$0xff]
    %v931 = vld [vmem:[#allocation5 + $0xd8] sm:$0xff]
    %v932 = vld [vmem:[#allocation5 + $0xe0] sm:$0xff]
    %v933 = vld [vmem:[#allocation5 + $0xe8] sm:$0xff]
    %v934 = vld [vmem:[#allocation5 + $0xf0] sm:$0xff]
    %v935 = vld [vmem:[#allocation5 + $0xf8] sm:$0xff]
    %v936 = vld [vmem:[#allocation5 + $0x100] sm:$0xff]
    %v937 = vld [vmem:[#allocation5 + $0x108] sm:$0xff]
    %v938 = vld [vmem:[#allocation5 + $0x110] sm:$0xff]
    %v939 = vld [vmem:[#allocation5 + $0x118] sm:$0xff]
    %v940 = vld [vmem:[#allocation5 + $0x120] sm:$0xff]
    %v941 = vld [vmem:[#allocation5 + $0x128] sm:$0xff]
    %v942 = vld [vmem:[#allocation5 + $0x130] sm:$0xff]
    %v943 = vld [vmem:[#allocation5 + $0x138] sm:$0xff]
    %v944 = vld [vmem:[#allocation5 + $0x140] sm:$0xff]
    %v945 = vld [vmem:[#allocation5 + $0x148] sm:$0xff]
    %v946 = vld [vmem:[#allocation5 + $0x150] sm:$0xff]
    %v947 = vld [vmem:[#allocation5 + $0x158] sm:$0xff]
    %v948 = vld [vmem:[#allocation5 + $0x160] sm:$0xff]
    %v949 = vld [vmem:[#allocation5 + $0x168] sm:$0xff]
    %v950 = vld [vmem:[#allocation5 + $0x170] sm:$0xff]
    %v951 = vld [vmem:[#allocation5 + $0x178] sm:$0xff]
    %952 = vmatprep.subr.mxu0 0.0
    %953 = vmatpush1.msra.mxu0 %v904
    %954 = vmatprep.subr.mxu0 0.0
    %955 = vmatpush1.msra.mxu0 %v905
    %956 = vmatprep.subr.mxu0 0.0
    %957 = vmatpush1.msra.mxu0 %v906
    %958 = vmatprep.subr.mxu0 0.0
    %959 = vmatpush1.msra.mxu0 %v907
    %960 = vmatprep.subr.mxu0 0.0
    %961 = vmatpush1.msra.mxu0 %v908
    %962 = vmatprep.subr.mxu0 0.0
    %963 = vmatpush1.msra.mxu0 %v909
    %964 = vmatprep.subr.mxu0 0.0
    %965 = vmatpush1.msra.mxu0 %v910
    %966 = vmatprep.subr.mxu0 0.0
    %967 = vmatpush1.msra.mxu0 %v911
    %968 = vmatprep.subr.mxu0 0.0
    %969 = vmatpush1.msra.mxu0 %v912
    %970 = vmatprep.subr.mxu0 0.0
    %971 = vmatpush1.msra.mxu0 %v913
    %972 = vmatprep.subr.mxu0 0.0
    %973 = vmatpush1.msra.mxu0 %v914
    %974 = vmatprep.subr.mxu0 0.0
    %975 = vmatpush1.msra.mxu0 %v915
    %976 = vmatprep.subr.mxu0 0.0
    %977 = vmatpush1.msra.mxu0 %v916
    %978 = vmatprep.subr.mxu0 0.0
    %979 = vmatpush1.msra.mxu0 %v917
    %980 = vmatprep.subr.mxu0 0.0
    %981 = vmatpush1.msra.mxu0 %v918
    %982 = vmatprep.subr.mxu0 0.0
    %983 = vmatpush1.msra.mxu0 %v919
    %984 = vmatprep.subr.mxu0 0.0
    %985 = vmatpush1.msra.mxu0 %v920
    %986 = vmatprep.subr.mxu0 0.0
    %987 = vmatpush1.msra.mxu0 %v921
    %988 = vmatprep.subr.mxu0 0.0
    %989 = vmatpush1.msra.mxu0 %v922
    %990 = vmatprep.subr.mxu0 0.0
    %991 = vmatpush1.msra.mxu0 %v923
    %992 = vmatprep.subr.mxu0 0.0
    %993 = vmatpush1.msra.mxu0 %v924
    %994 = vmatprep.subr.mxu0 0.0
    %995 = vmatpush1.msra.mxu0 %v925
    %996 = vmatprep.subr.mxu0 0.0
    %997 = vmatpush1.msra.mxu0 %v926
    %998 = vmatprep.subr.mxu0 0.0
    %999 = vmatpush1.msra.mxu0 %v927
    %1000 = vmatprep.subr.mxu0 0.0
    %1001 = vmatpush1.msra.mxu0 %v928
    %1002 = vmatprep.subr.mxu0 0.0
    %1003 = vmatpush1.msra.mxu0 %v929
    %1004 = vmatprep.subr.mxu0 0.0
    %1005 = vmatpush1.msra.mxu0 %v930
    %1006 = vmatprep.subr.mxu0 0.0
    %1007 = vmatpush1.msra.mxu0 %v931
    %1008 = vmatprep.subr.mxu0 0.0
    %1009 = vmatpush1.msra.mxu0 %v932
    %1010 = vmatprep.subr.mxu0 0.0
    %1011 = vmatpush1.msra.mxu0 %v933
    %1012 = vmatprep.subr.mxu0 0.0
    %1013 = vmatpush1.msra.mxu0 %v934
    %1014 = vmatprep.subr.mxu0 0.0
    %1015 = vmatpush1.msra.mxu0 %v935
    %1016 = vmatprep.mubr.f32.mxu0 %v730
    %1017 = vmatmul.mubr.f32.gmra.mrb[0].mxu0 %v801
    %v1018 = vpop.f32.mrb[0].mxu0
    %v1019 = vadd.f32 0.0, %v1018
    %v1020 = vpop.f32.mrb[0].mxu0
    %1021 = vmatprep.mubr.f32.mxu0 %v731
    %1022 = vmatmul.mubr.f32.gmra.mrb[0].mxu0 %v806
    %v1023 = vpop.f32.mrb[0].mxu0
    %v1024 = vadd.f32 0.0, %v1023
    %v1025 = vpop.f32.mrb[0].mxu0
    %1026 = vmatprep.mubr.f32.mxu0 %v732
    %1027 = vmatmul.mubr.f32.gmra.mrb[0].mxu0 %v811
    %v1028 = vpop.f32.mrb[0].mxu0
    %v1029 = vadd.f32 0.0, %v1028
    %v1030 = vpop.f32.mrb[0].mxu0
    %1031 = vmatprep.mubr.f32.mxu0 %v733
    %1032 = vmatmul.mubr.f32.gmra.mrb[0].mxu0 %v816
    %v1033 = vpop.f32.mrb[0].mxu0
    %v1034 = vadd.f32 0.0, %v1033
    %v1035 = vpop.f32.mrb[0].mxu0
    %1036 = vdwg.mxu0
    %1037 = vmatprep.subr.mxu0 0.0
    %1038 = vmatpush1.msra.mxu0 %v936
    %1039 = vmatprep.subr.mxu0 0.0
    %1040 = vmatpush1.msra.mxu0 %v937
    %1041 = vmatprep.subr.mxu0 0.0
    %1042 = vmatpush1.msra.mxu0 %v938
    %1043 = vmatprep.subr.mxu0 0.0
    %1044 = vmatpush1.msra.mxu0 %v939
    %1045 = vmatprep.subr.mxu0 0.0
    %1046 = vmatpush1.msra.mxu0 %v940
    %1047 = vmatprep.subr.mxu0 0.0
    %1048 = vmatpush1.msra.mxu0 %v941
    %1049 = vmatprep.subr.mxu0 0.0
    %1050 = vmatpush1.msra.mxu0 %v942
    %1051 = vmatprep.subr.mxu0 0.0
    %1052 = vmatpush1.msra.mxu0 %v943
    %1053 = vmatprep.subr.mxu0 0.0
    %1054 = vmatpush1.msra.mxu0 %v944
    %1055 = vmatprep.subr.mxu0 0.0
    %1056 = vmatpush1.msra.mxu0 %v945
    %1057 = vmatprep.subr.mxu0 0.0
    %1058 = vmatpush1.msra.mxu0 %v946
    %1059 = vmatprep.subr.mxu0 0.0
    %1060 = vmatpush1.msra.mxu0 %v947
    %1061 = vmatprep.subr.mxu0 0.0
    %1062 = vmatpush1.msra.mxu0 %v948
    %1063 = vmatprep.subr.mxu0 0.0
    %1064 = vmatpush1.msra.mxu0 %v949
    %1065 = vmatprep.subr.mxu0 0.0
    %1066 = vmatpush1.msra.mxu0 %v950
    %1067 = vmatprep.subr.mxu0 0.0
    %1068 = vmatpush1.msra.mxu0 %v951
    %1069 = vmatprep.subr.mxu0 0.0
    %1070 = vmatpush1.msra.mxu0 0.0
    %1071 = vmatprep.subr.mxu0 0.0
    %1072 = vmatpush1.msra.mxu0 0.0
    %1073 = vmatprep.subr.mxu0 0.0
    %1074 = vmatpush1.msra.mxu0 0.0
    %1075 = vmatprep.subr.mxu0 0.0
    %1076 = vmatpush1.msra.mxu0 0.0
    %1077 = vmatprep.subr.mxu0 0.0
    %1078 = vmatpush1.msra.mxu0 0.0
    %1079 = vmatprep.subr.mxu0 0.0
    %1080 = vmatpush1.msra.mxu0 0.0
    %1081 = vmatprep.subr.mxu0 0.0
    %1082 = vmatpush1.msra.mxu0 0.0
    %1083 = vmatprep.subr.mxu0 0.0
    %1084 = vmatpush1.msra.mxu0 0.0
    %1085 = vmatprep.subr.mxu0 0.0
    %1086 = vmatpush1.msra.mxu0 0.0
    %1087 = vmatprep.subr.mxu0 0.0
    %1088 = vmatpush1.msra.mxu0 0.0
    %1089 = vmatprep.subr.mxu0 0.0
    %1090 = vmatpush1.msra.mxu0 0.0
    %1091 = vmatprep.subr.mxu0 0.0
    %1092 = vmatpush1.msra.mxu0 0.0
    %1093 = vmatprep.subr.mxu0 0.0
    %1094 = vmatpush1.msra.mxu0 0.0
    %1095 = vmatprep.subr.mxu0 0.0
    %1096 = vmatpush1.msra.mxu0 0.0
    %1097 = vmatprep.subr.mxu0 0.0
    %1098 = vmatpush1.msra.mxu0 0.0
    %1099 = vmatprep.subr.mxu0 0.0
    %1100 = vmatpush1.msra.mxu0 0.0
    %1101 = vmatprep.mubr.f32.mxu0 0.0
    %1102 = vmatmul.mubr.f32.gmra.mrb[0].mxu0 %v886
    %v1103 = vpop.f32.mrb[0].mxu0
    %v1104 = vadd.f32 %v1019, %v1103
    %v1105 = vpop.f32.mrb[0].mxu0
    %1106 = vmatprep.mubr.f32.mxu0 0.0
    %1107 = vmatmul.mubr.f32.gmra.mrb[0].mxu0 %v891
    %v1108 = vpop.f32.mrb[0].mxu0
    %v1109 = vadd.f32 %v1024, %v1108
    %v1110 = vpop.f32.mrb[0].mxu0
    %1111 = vmatprep.mubr.f32.mxu0 0.0
    %1112 = vmatmul.mubr.f32.gmra.mrb[0].mxu0 %v896
    %v1113 = vpop.f32.mrb[0].mxu0
    %v1114 = vadd.f32 %v1029, %v1113
    %v1115 = vpop.f32.mrb[0].mxu0
    %1116 = vmatprep.mubr.f32.mxu0 0.0
    %1117 = vmatmul.mubr.f32.gmra.mrb[0].mxu0 %v901
    %v1118 = vpop.f32.mrb[0].mxu0
    %v1119 = vadd.f32 %v1034, %v1118
    %v1120 = vpop.f32.mrb[0].mxu0
    %1121 = vdwg.mxu0
    %v1122 = vadd.f32 %v1104, %v1109
    %v1123 = vadd.f32 %v1122, %v1114
    %v1124 = vadd.f32 %v1123, %v1119
    %v1125 = vrot.slane %v1124, 4
    %v1126 = vadd.f32 %v1124, %v1125
    %v1127 = vrot.slane %v1126, 2
    %v1128 = vadd.f32 %v1126, %v1127
    %v1129 = vrot.slane %v1128, 1
    %v1130 = vadd.f32 %v1128, %v1129
    %v1131 = vmul.f32 %v1104, %v1104
    %v1132 = vmul.f32 %v1109, %v1109
    %v1133 = vmul.f32 %v1114, %v1114
    %v1134 = vmul.f32 %v1119, %v1119
    %v1135 = vadd.f32 %v1131, %v1132
    %v1136 = vadd.f32 %v1135, %v1133
    %v1137 = vadd.f32 %v1136, %v1134
    %v1138 = vrot.slane %v1137, 4
    %v1139 = vadd.f32 %v1137, %v1138
    %v1140 = vrot.slane %v1139, 2
    %v1141 = vadd.f32 %v1139, %v1140
    %v1142 = vrot.slane %v1141, 1
    %v1143 = vadd.f32 %v1141, %v1142
    %v1144 = vsel %vm514, %v1130, %v1143
    %1145 = vmatprep.subr.mxu0 0.0
    %1146 = vmatpush1.msra.mxu0 %v516
    %1147 = vmatprep.subr.mxu0 0.0
    %1148 = vmatpush1.msra.mxu0 %v517
    %1149 = vmatprep.subr.mxu0 0.0
    %1150 = vmatpush1.msra.mxu0 %v518
    %1151 = vmatprep.subr.mxu0 0.0
    %1152 = vmatpush1.msra.mxu0 %v519
    %1153 = vmatprep.subr.mxu0 0.0
    %1154 = vmatpush1.msra.mxu0 %v520
    %1155 = vmatprep.subr.mxu0 0.0
    %1156 = vmatpush1.msra.mxu0 %v521
    %1157 = vmatprep.subr.mxu0 0.0
    %1158 = vmatpush1.msra.mxu0 %v522
    %1159 = vmatprep.subr.mxu0 0.0
    %1160 = vmatpush1.msra.mxu0 %v523
    %1161 = vmatprep.subr.mxu0 0.0
    %1162 = vmatpush1.msra.mxu0 %v524
    %1163 = vmatprep.subr.mxu0 0.0
    %1164 = vmatpush1.msra.mxu0 %v525
    %1165 = vmatprep.subr.mxu0 0.0
    %1166 = vmatpush1.msra.mxu0 %v526
    %1167 = vmatprep.subr.mxu0 0.0
    %1168 = vmatpush1.msra.mxu0 %v527
    %1169 = vmatprep.subr.mxu0 0.0
    %1170 = vmatpush1.msra.mxu0 %v528
    %1171 = vmatprep.subr.mxu0 0.0
    %1172 = vmatpush1.msra.mxu0 %v529
    %1173 = vmatprep.subr.mxu0 0.0
    %1174 = vmatpush1.msra.mxu0 %v530
    %1175 = vmatprep.subr.mxu0 0.0
    %1176 = vmatpush1.msra.mxu0 %v531
    %1177 = vmatprep.subr.mxu0 0.0
    %1178 = vmatpush1.msra.mxu0 0.0
    %1179 = vmatprep.subr.mxu0 0.0
    %1180 = vmatpush1.msra.mxu0 0.0
    %1181 = vmatprep.subr.mxu0 0.0
    %1182 = vmatpush1.msra.mxu0 0.0
    %1183 = vmatprep.subr.mxu0 0.0
    %1184 = vmatpush1.msra.mxu0 0.0
    %1185 = vmatprep.subr.mxu0 0.0
    %1186 = vmatpush1.msra.mxu0 0.0
    %1187 = vmatprep.subr.mxu0 0.0
    %1188 = vmatpush1.msra.mxu0 0.0
    %1189 = vmatprep.subr.mxu0 0.0
    %1190 = vmatpush1.msra.mxu0 0.0
    %1191 = vmatprep.subr.mxu0 0.0
    %1192 = vmatpush1.msra.mxu0 0.0
    %1193 = vmatprep.subr.mxu0 0.0
    %1194 = vmatpush1.msra.mxu0 0.0
    %1195 = vmatprep.subr.mxu0 0.0
    %1196 = vmatpush1.msra.mxu0 0.0
    %1197 = vmatprep.subr.mxu0 0.0
    %1198 = vmatpush1.msra.mxu0 0.0
    %1199 = vmatprep.subr.mxu0 0.0
    %1200 = vmatpush1.msra.mxu0 0.0
    %1201 = vmatprep.subr.mxu0 0.0
    %1202 = vmatpush1.msra.mxu0 0.0
    %1203 = vmatprep.subr.mxu0 0.0
    %1204 = vmatpush1.msra.mxu0 0.0
    %1205 = vmatprep.subr.mxu0 0.0
    %1206 = vmatpush1.msra.mxu0 0.0
    %1207 = vmatprep.subr.mxu0 0.0
    %1208 = vmatpush1.msra.mxu0 0.0
    %1209 = vmatprep.mubr.f32.mxu0 0.0
    %1210 = vmatmul.mubr.f32.gmra.mrb[0].mxu0 %v1144
    %v1211 = vpop.f32.mrb[0].mxu0
    %v1212 = vadd.f32 0.0, %v1211
    %v1213 = vpop.f32.mrb[0].mxu0
    %1214 = vdwg.mxu0
    %v1215 = vmul.f32 %v1212, 0.001953125
    %v1216 = vmul.f32 %v1215, %v1215
    %v1218 = vrot.slane %v1216, 7
    %v1220 = vsub.f32 %v1215, %v1218
    %v1221 = vadd.f32 %v1220, 1e-05
    %v1222 = vrsqrt.pop %v1221
    %v1223 = vld [vmem:[%s7] sm:$0x1]
    %v1226 = vunpack.c.l.s4 1966171168
    %v1227 = vunpack.c.0.s8 %v1226
    %v1228 = vlaneseq
    %v1229 = vshrl.u32 %v1228, 7
    %v1230 = vsub.s32 %v1227, %v1229
    %v1231 = vrot.slane %v1222, %v1230
    %v1232 = vcombine.high %v1231, %v1231
    %v1234 = vunpack.c.l.s4 1966171168
    %v1235 = vunpack.c.0.s8 %v1234
    %v1236 = vlaneseq
    %v1237 = vshrl.u32 %v1236, 7
    %v1238 = vsub.s32 %v1235, %v1237
    %v1239 = vrot.slane %v1232, %v1238
    %v1241 = vmul.f32 %v1223, %v1239
    %v1242 = vld [vmem:[%s8] sm:$0x1]
    %v1243 = vmul.f32 %v1215, %v1241
    %v1244 = vsub.f32 %v1242, %v1243
    %v1246 = vlaneseq
    %v1247 = vshrl.u32 %v1246, 7
    %v1248 = vsub.s32 0, %v1247
    %v1249 = vrot.slane %v1244, %v1248
    %v1251 = vsel %vm514, %v1241, %v1249
    %v1253 = vsel %vm640, %v1251, 0
    %1255 = vmatprep.subr.mxu0 0.0
    %1256 = vmatpush1.msra.mxu0 %v639
    %1257 = vmatprep.subr.mxu0 0.0
    %1258 = vmatpush1.msra.mxu0 0.0
    %1259 = vmatprep.subr.mxu0 0.0
    %1260 = vmatpush1.msra.mxu0 0.0
    %1261 = vmatprep.subr.mxu0 0.0
    %1262 = vmatpush1.msra.mxu0 0.0
    %1263 = vmatprep.subr.mxu0 0.0
    %1264 = vmatpush1.msra.mxu0 0.0
    %1265 = vmatprep.subr.mxu0 0.0
    %1266 = vmatpush1.msra.mxu0 0.0
    %1267 = vmatprep.subr.mxu0 0.0
    %1268 = vmatpush1.msra.mxu0 0.0
    %1269 = vmatprep.subr.mxu0 0.0
    %1270 = vmatpush1.msra.mxu0 0.0
    %1271 = vmatprep.subr.mxu0 0.0
    %1272 = vmatpush1.msra.mxu0 0.0
    %1273 = vmatprep.subr.mxu0 0.0
    %1274 = vmatpush1.msra.mxu0 0.0
    %1275 = vmatprep.subr.mxu0 0.0
    %1276 = vmatpush1.msra.mxu0 0.0
    %1277 = vmatprep.subr.mxu0 0.0
    %1278 = vmatpush1.msra.mxu0 0.0
    %1279 = vmatprep.subr.mxu0 0.0
    %1280 = vmatpush1.msra.mxu0 0.0
    %1281 = vmatprep.subr.mxu0 0.0
    %1282 = vmatpush1.msra.mxu0 0.0
    %1283 = vmatprep.subr.mxu0 0.0
    %1284 = vmatpush1.msra.mxu0 0.0
    %1285 = vmatprep.subr.mxu0 0.0
    %1286 = vmatpush1.msra.mxu0 0.0
    %1287 = vmatprep.subr.mxu0 0.0
    %1288 = vmatpush1.msra.mxu0 0.0
    %1289 = vmatprep.subr.mxu0 0.0
    %1290 = vmatpush1.msra.mxu0 0.0
    %1291 = vmatprep.subr.mxu0 0.0
    %1292 = vmatpush1.msra.mxu0 0.0
    %1293 = vmatprep.subr.mxu0 0.0
    %1294 = vmatpush1.msra.mxu0 0.0
    %1295 = vmatprep.subr.mxu0 0.0
    %1296 = vmatpush1.msra.mxu0 0.0
    %1297 = vmatprep.subr.mxu0 0.0
    %1298 = vmatpush1.msra.mxu0 0.0
    %1299 = vmatprep.subr.mxu0 0.0
    %1300 = vmatpush1.msra.mxu0 0.0
    %1301 = vmatprep.subr.mxu0 0.0
    %1302 = vmatpush1.msra.mxu0 0.0
    %1303 = vmatprep.subr.mxu0 0.0
    %1304 = vmatpush1.msra.mxu0 0.0
    %1305 = vmatprep.subr.mxu0 0.0
    %1306 = vmatpush1.msra.mxu0 0.0
    %1307 = vmatprep.subr.mxu0 0.0
    %1308 = vmatpush1.msra.mxu0 0.0
    %1309 = vmatprep.subr.mxu0 0.0
    %1310 = vmatpush1.msra.mxu0 0.0
    %1311 = vmatprep.subr.mxu0 0.0
    %1312 = vmatpush1.msra.mxu0 0.0
    %1313 = vmatprep.subr.mxu0 0.0
    %1314 = vmatpush1.msra.mxu0 0.0
    %1315 = vmatprep.subr.mxu0 0.0
    %1316 = vmatpush1.msra.mxu0 0.0
    %1317 = vmatprep.subr.mxu0 0.0
    %1318 = vmatpush1.msra.mxu0 0.0
    %1319 = vmatprep.mubr.f32.mxu0 0.0
    %1320 = vmatmul.mubr.f32.gmra.mrb[0].mxu0 %v1253
    %v1321 = vpop.f32.mrb[0].mxu0
    %v1322 = vadd.f32 0.0, %v1321
    %v1323 = vpop.f32.mrb[0].mxu0
    %1324 = vdwg.mxu0
    %v1325 = vlaneseq
    %v1326 = vshrl.u32 %v1325, 7
    %v1327 = vsub.s32 0, %v1326
    %v1328 = vrot.slane %v1322, %v1327
    %v1329 = vmul.f32 %v1104, %v1328
    %v1330 = vmul.f32 %v1109, %v1328
    %v1331 = vmul.f32 %v1114, %v1328
    %v1332 = vmul.f32 %v1119, %v1328
    %v1333 = vlaneseq
    %v1334 = vshrl.u32 %v1333, 7
    %v1335 = vsub.s32 1, %v1334
    %v1336 = vrot.slane %v1322, %v1335
    %v1337 = vadd.f32 %v1329, %v1336
    %v1338 = vadd.f32 %v1330, %v1336
    %v1339 = vadd.f32 %v1331, %v1336
    %v1340 = vadd.f32 %v1332, %v1336
    %v1341 = vmax.f32 %v1337, 0.0
    %v1342 = vmax.f32 %v1338, 0.0
    %v1343 = vmax.f32 %v1339, 0.0
    %v1344 = vmax.f32 %v1340, 0.0
    %1345 = vst [vmem:[#allocation7] sm:$0xff] %v1341
    %1346 = vst [vmem:[#allocation7 + $0x8] sm:$0xff] %v1342
    %1347 = vst [vmem:[#allocation7 + $0x10] sm:$0xff] %v1343
    %1348 = vst [vmem:[#allocation7 + $0x18] sm:$0xff] %v1344
    // Predicated region
    $region54: #{tpu_custom_call.1} parent=1 // pred_check
      _
    $region55: #{tpu_custom_call.1} parent=1 // pred_check_branch
      %1350 = sbr.rel (0) target = $region57
    $region56: #{tpu_custom_call.1} parent=1 // pred_region
      %s1352 = ssub.s32 512, 512
      %1353 = vsyncadd [#allocation4], %s1352
      %s1354 = sshll.u32 [#allocation7], 4
      %s1355 = int_to_ptr.vmem [resolvable:$true] %s1354
      %1360 = dma.vmem_to_hbm [thread:$0]  %s1355, 512, %s11, [#allocation4], 128, 128, 8
    $region57: #{tpu_custom_call.1} parent=1 // pred_fallthru
      _
    // Predicated region
    $region58: #{tpu_custom_call.1} parent=1 // pred_check
      _
    $region59: #{tpu_custom_call.1} parent=1 // pred_check_branch
      %1362 = sbr.rel (0) target = $region61
    $region60: #{tpu_custom_call.1} parent=1 // pred_region
      %1363 = dma.done [#allocation4], 512
    $region61: #{tpu_custom_call.1} parent=1 // pred_fallthru
      _
    %1364 = vsyncpa [#allocation3], 1
    %1365 = vsyncpa [#allocation6], 1
    %1366 = vsyncpa [#allocation4], 1

</llo_original>
